<compile_context>
chip_gen: v7x
topology: tpu7x:2x2x1
jax: 0.10.0
libtpu: 0.0.40
codegen_flags: <defaults>
</compile_context>

<pallas_src>
import functools

import jax
import jax.numpy as jnp
from jax.experimental import pallas as pl
from jax.experimental.pallas import tpu as pltpu

_C_IN = 2048
_N_HIDDEN = 256
_N_OUT = 2 * 17
_N_OUT_PAD = 128  # lane-dense padded fc2 output width


# ----------------------------------------------------------------------------
# Kernel: avg-pool (streamed over HW) -> fc1 -> ReLU -> fc2
# ----------------------------------------------------------------------------
def _disc_featuremap_kernel(x_ref, w1_ref, b1_ref, w2_ref, b2_ref,
                            out_ref, acc_ref, *, inv_hw):
    # x_ref  : (B_t, HW_t, 2048)  input dtype, channels on lanes
    # w1_ref : (2048, 256) f32    resident across the HW loop
    # b1_ref : (1, 256)    f32
    # w2_ref : (256, 128)  f32    zero-padded from (256, 34)
    # b2_ref : (1, 128)    f32    zero-padded from (1, 34)
    # out_ref: (B_t, 128)  f32    lane-dense padded output
    # acc_ref: (B_t, 2048) f32    pooled-sum accumulator (persists over HW axis)
    s = pl.program_id(1)

    @pl.when(s == 0)
    def _init():
        acc_ref[...] = jnp.zeros_like(acc_ref)

    # Partial spatial sum for this tile: lanes (channels) stay full width.
    acc_ref[...] += jnp.sum(x_ref[...].astype(jnp.float32), axis=1)

    @pl.when(s == pl.num_programs(1) - 1)
    def _finalize():
        pooled = acc_ref[...] * inv_hw                                 # (B_t, 2048)
        h = jnp.dot(pooled, w1_ref[...],
                    preferred_element_type=jnp.float32) + b1_ref[...]  # (B_t, 256)
        h = jnp.maximum(h, 0.0)                                        # ReLU
        y = jnp.dot(h, w2_ref[...],
                    preferred_element_type=jnp.float32) + b2_ref[...]  # (B_t, 128)
        out_ref[...] = y


# ----------------------------------------------------------------------------
# Tiling helpers
# ----------------------------------------------------------------------------
def _choose_hw_tile(hw, b_tile, itemsize):
    """Largest multiple-of-8 HW tile that divides hw and keeps each x block
    around <=4 MiB (BlockSpec double-buffers it; ample headroom even for
    v7x's 64 MiB VMEM).  Falls back to the full extent (always legal)."""
    if hw % 8 != 0:
        return hw
    budget = 4 * 1024 * 1024
    max_rows = max(8, budget // (b_tile * _C_IN * itemsize))
    max_rows = (max_rows // 8) * 8
    if hw <= max_rows:
        return hw
    t = (min(hw, max_rows) // 8) * 8
    while t >= 8:
        if hw % t == 0:
            return t
        t -= 8
    return hw


# ----------------------------------------------------------------------------
# Parameter construction (mimics nn.Linear default init ranges)
# ----------------------------------------------------------------------------
def init_discriminator_params(key):
    def linear_init(k, fan_in, fan_out):
        kw, kb = jax.random.split(k)
        bound = 1.0 / jnp.sqrt(fan_in)
        # Stored transposed: (fan_in, fan_out), so kernel does x @ W.
        w = jax.random.uniform(kw, (fan_in, fan_out), jnp.float32, -bound, bound)
        b = jax.random.uniform(kb, (1, fan_out), jnp.float32, -bound, bound)
        return w, b

    k1, k2, k3 = jax.random.split(key, 3)
    w1, b1 = linear_init(k1, _C_IN, _N_HIDDEN)   # fc1
    w2, b2 = linear_init(k2, _N_HIDDEN, _N_OUT)  # fc2
    w3, b3 = linear_init(k3, _N_OUT, 1)          # fc3
    return dict(w1=w1, b1=b1, w2=w2, b2=b2, w3=w3, b3=b3)


# ----------------------------------------------------------------------------
# Wrapper
# ----------------------------------------------------------------------------
def discriminator_forward(params, feature, feature_map=True):
    if feature_map:
        B, C, H, W = feature.shape
        assert C == _C_IN, "fc1 expects 2048 input channels"
        hw = H * W

        # Layout plumbing: channels-last, lane-dense (B, HW, 2048).
        x = jnp.transpose(feature, (0, 2, 3, 1)).reshape(B, hw, C)

        b_tile = min(B, 8)
        hw_tile = _choose_hw_tile(hw, b_tile, x.dtype.itemsize)
        grid = (pl.cdiv(B, b_tile), hw // hw_tile)

        w1 = params["w1"].astype(jnp.float32)     # (2048, 256)
        b1 = params["b1"].astype(jnp.float32)     # (1, 256)
        # Zero-pad fc2 to a 128-wide lane-dense output block.
        w2p = jnp.zeros((_N_HIDDEN, _N_OUT_PAD), jnp.float32)
        w2p = w2p.at[:, :_N_OUT].set(params["w2"].astype(jnp.float32))
        b2p = jnp.zeros((1, _N_OUT_PAD), jnp.float32)
        b2p = b2p.at[:, :_N_OUT].set(params["b2"].astype(jnp.float32))

        out = pl.pallas_call(
            functools.partial(_disc_featuremap_kernel, inv_hw=1.0 / float(hw)),
            out_shape=jax.ShapeDtypeStruct((B, _N_OUT_PAD), jnp.float32),
            grid_spec=pltpu.PrefetchScalarGridSpec(
                num_scalar_prefetch=0,
                grid=grid,
                in_specs=[
                    # activations: stream HW tiles
                    pl.BlockSpec((b_tile, hw_tile, _C_IN), lambda b, s: (b, s, 0)),
                    # weights/biases: constant block index -> resident in VMEM
                    pl.BlockSpec((_C_IN, _N_HIDDEN), lambda b, s: (0, 0)),
                    pl.BlockSpec((1, _N_HIDDEN), lambda b, s: (0, 0)),
                    pl.BlockSpec((_N_HIDDEN, _N_OUT_PAD), lambda b, s: (0, 0)),
                    pl.BlockSpec((1, _N_OUT_PAD), lambda b, s: (0, 0)),
                ],
                out_specs=pl.BlockSpec((b_tile, _N_OUT_PAD), lambda b, s: (b, 0)),
                scratch_shapes=[pltpu.VMEM((b_tile, _C_IN), jnp.float32)],
            ),
            compiler_params=pltpu.CompilerParams(
                dimension_semantics=("parallel", "arbitrary"),
                vmem_limit_bytes=32 * 1024 * 1024,
            ),
        )(x, w1, b1, w2p, b2p)
        return out[:, :_N_OUT].reshape(B, 17, 2)
    else:
        # fc3: (B, 34) @ (34, 1) + b3 — too tiny for a pallas_call (fixed
        # overhead dominates); XLA fuses this into neighboring ops for free.
        x = feature.reshape(feature.shape[0], -1).astype(jnp.float32)
        assert x.shape[1] == _N_OUT, "fc3 expects 34 input features"
        return x @ params["w3"].astype(jnp.float32) + params["b3"].astype(jnp.float32)


# ----------------------------------------------------------------------------
# Pure-JAX reference (for a sanity check in the driver)
# ----------------------------------------------------------------------------
def _discriminator_ref(params, feature):
    B = feature.shape[0]
    x = jnp.mean(feature, axis=(2, 3))                     # adaptive avg pool -> (B, 2048)
    h = jnp.maximum(x @ params["w1"] + params["b1"], 0.0)  # fc1 + ReLU
    y = h @ params["w2"] + params["b2"]                    # fc2
    return y.reshape(B, 17, 2)


# ----------------------------------------------------------------------------
# Driver
# ----------------------------------------------------------------------------
if __name__ == "__main__":
    key = jax.random.PRNGKey(0)
    k_param, k_feat = jax.random.split(key)

    params = init_discriminator_params(k_param)

    # Small spatial size (channels must be 2048 to match fc1).
    B, C, H, W = 2, 2048, 8, 8
    feature = jax.random.normal(k_feat, (B, C, H, W), jnp.float32)

    # feature_map=True path: pool -> fc1 -> ReLU -> fc2 -> (B, 17, 2)
    out_pose = discriminator_forward(params, feature, feature_map=True)
    out_pose = jax.block_until_ready(out_pose)
    assert out_pose.shape == (B, 17, 2)

    # Loose-tolerance sanity check against a pure-JAX reference.
    ref = jax.block_until_ready(_discriminator_ref(params, feature))
    assert jnp.allclose(out_pose, ref, rtol=2e-2, atol=2e-2), "mismatch vs reference"

    # feature_map=False path: flatten (B, 17, 2) -> (B, 34) -> fc3 -> (B, 1)
    out_cls = discriminator_forward(params, out_pose, feature_map=False)
    out_cls = jax.block_until_ready(out_cls)
    assert out_cls.shape == (B, 1)

    print("KERNEL_OK")
</pallas_src>

<mosaic_0001>
module attributes {stable_mosaic.version = 11 : i64} {
  func.func @_disc_featuremap_kernel(%arg0: i32, %arg1: i32, %arg2: memref<2x64x2048xf32, #tpu.memory_space<vmem>>, %arg3: memref<2048x256xf32, #tpu.memory_space<vmem>>, %arg4: memref<1x256xf32, #tpu.memory_space<vmem>>, %arg5: memref<256x128xf32, #tpu.memory_space<vmem>>, %arg6: memref<1x128xf32, #tpu.memory_space<vmem>>, %arg7: memref<2x128xf32, #tpu.memory_space<vmem>>, %arg8: memref<2x2048xf32, #tpu.memory_space<vmem>>) attributes {dimension_semantics = [#tpu.dimension_semantics<parallel>, #tpu.dimension_semantics<arbitrary>], iteration_bounds = array<i64: 1, 1>, scalar_prefetch = 0 : i64, scratch_operands = 1 : i64, tpu.core_type = #tpu.core_type<tc>, window_params = [{transform_indices = @transform_0, window_bounds = array<i64: 2, 64, 2048>}, {pipeline_mode = #tpu.pipeline_mode<synchronous>, transform_indices = @transform_1, window_bounds = array<i64: 2048, 256>}, {pipeline_mode = #tpu.pipeline_mode<synchronous>, transform_indices = @transform_2, window_bounds = array<i64: 1, 256>}, {pipeline_mode = #tpu.pipeline_mode<synchronous>, transform_indices = @transform_3, window_bounds = array<i64: 256, 128>}, {pipeline_mode = #tpu.pipeline_mode<synchronous>, transform_indices = @transform_4, window_bounds = array<i64: 1, 128>}, {transform_indices = @transform_5, window_bounds = array<i64: 2, 128>}]} {
    %c0_i32 = arith.constant 0 : i32
    %0 = arith.cmpi eq, %arg1, %c0_i32 : i32
    %1 = arith.extui %0 : i1 to i32
    %c0_i32_0 = arith.constant 0 : i32
    %2 = arith.cmpi ne, %1, %c0_i32_0 : i32
    scf.if %2 {
      %cst_9 = arith.constant 0.000000e+00 : f32
      %11 = vector.broadcast %cst_9 : f32 to vector<2x2048xf32>
      %c0_10 = arith.constant 0 : index
      %c0_11 = arith.constant 0 : index
      %12 = vector.load %arg8[%c0_10, %c0_11] : memref<2x2048xf32, #tpu.memory_space<vmem>>, vector<2x2048xf32>
      tpu.vector_store %arg8[%c0_10, %c0_11], %11 {strides = array<i32>} : memref<2x2048xf32, #tpu.memory_space<vmem>>, vector<2x2048xf32>,
    } else {
    }
    %c0 = arith.constant 0 : index
    %c0_1 = arith.constant 0 : index
    %3 = vector.load %arg8[%c0, %c0_1] : memref<2x2048xf32, #tpu.memory_space<vmem>>, vector<2x2048xf32>
    %c0_2 = arith.constant 0 : index
    %c0_3 = arith.constant 0 : index
    %c0_4 = arith.constant 0 : index
    %4 = vector.load %arg2[%c0_2, %c0_3, %c0_4] : memref<2x64x2048xf32, #tpu.memory_space<vmem>>, vector<2x64x2048xf32>
    %cst = arith.constant dense<0.000000e+00> : vector<2x2048xf32>
    %5 = vector.multi_reduction <add>, %4, %cst [1] : vector<2x64x2048xf32> to vector<2x2048xf32>
    %6 = arith.addf %3, %5 : vector<2x2048xf32>
    %c0_5 = arith.constant 0 : index
    %c0_6 = arith.constant 0 : index
    %7 = vector.load %arg8[%c0_5, %c0_6] : memref<2x2048xf32, #tpu.memory_space<vmem>>, vector<2x2048xf32>
    tpu.vector_store %arg8[%c0_5, %c0_6], %6 {strides = array<i32>} : memref<2x2048xf32, #tpu.memory_space<vmem>>, vector<2x2048xf32>,
    %c0_i32_7 = arith.constant 0 : i32
    %8 = arith.cmpi eq, %arg1, %c0_i32_7 : i32
    %9 = arith.extui %8 : i1 to i32
    %c0_i32_8 = arith.constant 0 : i32
    %10 = arith.cmpi ne, %9, %c0_i32_8 : i32
    scf.if %10 {
      %c0_9 = arith.constant 0 : index
      %c0_10 = arith.constant 0 : index
      %11 = vector.load %arg8[%c0_9, %c0_10] : memref<2x2048xf32, #tpu.memory_space<vmem>>, vector<2x2048xf32>
      %cst_11 = arith.constant 1.562500e-02 : f32
      %12 = vector.broadcast %cst_11 : f32 to vector<2x2048xf32>
      %13 = arith.mulf %11, %12 : vector<2x2048xf32>
      %c0_12 = arith.constant 0 : index
      %c0_13 = arith.constant 0 : index
      %14 = vector.load %arg3[%c0_12, %c0_13] : memref<2048x256xf32, #tpu.memory_space<vmem>>, vector<2048x256xf32>
      %cst_14 = arith.constant dense<0.000000e+00> : vector<2x256xf32>
      %15 = tpu.matmul %13, %14, %cst_14 {dimension_numbers = #tpu.dot_dimension_numbers<[1], [0], [0], [1], [0, 0, 1, 1], [], []>} : vector<2x2048xf32>, vector<2048x256xf32>, vector<2x256xf32> -> vector<2x256xf32>
      %c0_15 = arith.constant 0 : index
      %c0_16 = arith.constant 0 : index
      %16 = vector.load %arg4[%c0_15, %c0_16] : memref<1x256xf32, #tpu.memory_space<vmem>>, vector<1x256xf32>
      %17 = vector.broadcast %16 : vector<1x256xf32> to vector<2x256xf32>
      %18 = arith.addf %15, %17 : vector<2x256xf32>
      %cst_17 = arith.constant 0.000000e+00 : f32
      %19 = vector.broadcast %cst_17 : f32 to vector<2x256xf32>
      %20 = arith.maximumf %18, %19 : vector<2x256xf32>
      %c0_18 = arith.constant 0 : index
      %c0_19 = arith.constant 0 : index
      %21 = vector.load %arg5[%c0_18, %c0_19] : memref<256x128xf32, #tpu.memory_space<vmem>>, vector<256x128xf32>
      %cst_20 = arith.constant dense<0.000000e+00> : vector<2x128xf32>
      %22 = tpu.matmul %20, %21, %cst_20 {dimension_numbers = #tpu.dot_dimension_numbers<[1], [0], [0], [1], [0, 0, 1, 1], [], []>} : vector<2x256xf32>, vector<256x128xf32>, vector<2x128xf32> -> vector<2x128xf32>
      %c0_21 = arith.constant 0 : index
      %c0_22 = arith.constant 0 : index
      %23 = vector.load %arg6[%c0_21, %c0_22] : memref<1x128xf32, #tpu.memory_space<vmem>>, vector<1x128xf32>
      %24 = vector.broadcast %23 : vector<1x128xf32> to vector<2x128xf32>
      %25 = arith.addf %22, %24 : vector<2x128xf32>
      %c0_23 = arith.constant 0 : index
      %c0_24 = arith.constant 0 : index
      %26 = vector.load %arg7[%c0_23, %c0_24] : memref<2x128xf32, #tpu.memory_space<vmem>>, vector<2x128xf32>
      tpu.vector_store %arg7[%c0_23, %c0_24], %25 {strides = array<i32>} : memref<2x128xf32, #tpu.memory_space<vmem>>, vector<2x128xf32>,
    } else {
    }
    return
  }
  func.func @transform_0(%arg0: i32, %arg1: i32) -> (i32, i32, i32) {
    %c0_i32 = arith.constant 0 : i32
    %c0_i32_0 = arith.constant 0 : i32
    return %arg0, %arg1, %c0_i32 : i32, i32, i32
  }
  func.func @transform_1(%arg0: i32, %arg1: i32) -> (i32, i32) {
    %c0_i32 = arith.constant 0 : i32
    %c0_i32_0 = arith.constant 0 : i32
    %c0_i32_1 = arith.constant 0 : i32
    return %c0_i32, %c0_i32_0 : i32, i32
  }
  func.func @transform_2(%arg0: i32, %arg1: i32) -> (i32, i32) {
    %c0_i32 = arith.constant 0 : i32
    %c0_i32_0 = arith.constant 0 : i32
    %c0_i32_1 = arith.constant 0 : i32
    return %c0_i32, %c0_i32_0 : i32, i32
  }
  func.func @transform_3(%arg0: i32, %arg1: i32) -> (i32, i32) {
    %c0_i32 = arith.constant 0 : i32
    %c0_i32_0 = arith.constant 0 : i32
    %c0_i32_1 = arith.constant 0 : i32
    return %c0_i32, %c0_i32_0 : i32, i32
  }
  func.func @transform_4(%arg0: i32, %arg1: i32) -> (i32, i32) {
    %c0_i32 = arith.constant 0 : i32
    %c0_i32_0 = arith.constant 0 : i32
    %c0_i32_1 = arith.constant 0 : i32
    return %c0_i32, %c0_i32_0 : i32, i32
  }
  func.func @transform_5(%arg0: i32, %arg1: i32) -> (i32, i32) {
    %c0_i32 = arith.constant 0 : i32
    %c0_i32_0 = arith.constant 0 : i32
    return %arg0, %c0_i32 : i32, i32
  }
}

</mosaic_0001>

<llo_original>
// kernel: tpu_custom_call.1
$region0: #{tpu_custom_call.1}
  #allocation0 [shape = 'u32[]', space=smem, size = 0x4, offset = 0x4, fixed_abs, tag = 'smem constant byte address 0x4 - core index']
  #allocation1 [shape = 'u32[144,128]{1,0:T(1,128)}', space=vmem, size = 0x12000, scoped, tag = 'internal scratch']
  #allocation2 [shape = 'f32[2,2048]{1,0:T(2,128)}', space=vmem, size = 0x4000, scoped, tag = 'scratch operand']
  %s0 = inlined_call_operand.hbm [shape: f32[2,64,2048], index: 0, kind: input, shape index: {}]
  %s1 = inlined_call_operand.hbm [shape: f32[2048,256], index: 1, kind: input, shape index: {}]
  %s2 = inlined_call_operand.hbm [shape: f32[1,256], index: 2, kind: input, shape index: {}]
  %s3 = inlined_call_operand.hbm [shape: f32[256,128], index: 3, kind: input, shape index: {}]
  %s4 = inlined_call_operand.hbm [shape: f32[1,128], index: 4, kind: input, shape index: {}]
  %s5 = inlined_call_operand.hbm [shape: f32[2,128], index: 5, kind: output, shape index: {}]
  %s6 = sld [smem:[#allocation0]]
  $region58: #{tpu_custom_call.1} parent=0
    _
  %s8 = ssub.s32 1, %s6
  %s9 = scalar_select 0, %s8, %s6
  $region1: #{tpu_custom_call.1} parent=0
    #allocation3 [shape = 'u8[1048576]{0}', space=vmem, size = 0x100000, scoped, tag = 'input window, operand 0, single buffered']
    #allocation4 [shape = 's32[1]{0}', space=sflag, size = 0x4, scoped, tag = 'scoped memory for tpu_custom_call.1']
    #allocation5 [shape = 's32[1]{0}', space=sflag, size = 0x4, scoped, tag = 'scoped memory for tpu_custom_call.1']
    #allocation6 [shape = 'u8[2097152]{0}', space=vmem, size = 0x200000, scoped, tag = 'input window, operand 1, single buffered']
    #allocation7 [shape = 's32[1]{0}', space=sflag, size = 0x4, scoped, tag = 'scoped memory for tpu_custom_call.1']
    #allocation8 [shape = 'u8[1024]{0}', space=vmem, size = 0x400, scoped, tag = 'input window, operand 2, single buffered']
    #allocation9 [shape = 'u8[131072]{0}', space=vmem, size = 0x20000, scoped, tag = 'input window, operand 3, single buffered']
    #allocation10 [shape = 's32[1]{0}', space=sflag, size = 0x4, scoped, tag = 'scoped memory for tpu_custom_call.1']
    #allocation11 [shape = 'u8[512]{0}', space=vmem, size = 0x400, scoped, tag = 'input window, operand 4, single buffered']
    #allocation12 [shape = 'u8[1024]{0}', space=vmem, size = 0x400, scoped, tag = 'output window, operand 0, single buffered']
    %10 = vsyncpa [#allocation4], 0
    %11 = vsyncpa [#allocation7], 0
    %12 = vsyncpa [#allocation10], 0
    %13 = vsyncpa [#allocation5], 0
    // Predicated region
    $region2: #{tpu_custom_call.1} parent=1 // pred_check
      _
    $region3: #{tpu_custom_call.1} parent=1 // pred_check_branch
      %15 = sbr.rel (0) target = $region5
    $region4: #{tpu_custom_call.1} parent=1 // pred_region
      %s17 = ssub.s32 32768, 32768
      %18 = vsyncadd [#allocation4], %s17
      %s19 = sshll.u32 [#allocation3], 4
      %s20 = int_to_ptr.vmem [resolvable:$true] %s19
      %25 = dma.hbm_to_vmem [thread:$0]  %s0, 32768, %s20, [#allocation4], 2048, 2048, 128
    $region5: #{tpu_custom_call.1} parent=1 // pred_fallthru
      _
    // Predicated region
    $region6: #{tpu_custom_call.1} parent=1 // pred_check
      _
    $region7: #{tpu_custom_call.1} parent=1 // pred_check_branch
      %27 = sbr.rel (0) target = $region9
    $region8: #{tpu_custom_call.1} parent=1 // pred_region
      %s29 = ssub.s32 65536, 65536
      %30 = vsyncadd [#allocation7], %s29
      %s31 = sshll.u32 [#allocation6], 4
      %s32 = int_to_ptr.vmem [resolvable:$true] %s31
      %37 = dma.hbm_to_vmem [thread:$0]  %s1, 65536, %s32, [#allocation7], 256, 256, 16
    $region9: #{tpu_custom_call.1} parent=1 // pred_fallthru
      _
    // Predicated region
    $region10: #{tpu_custom_call.1} parent=1 // pred_check
      _
    $region11: #{tpu_custom_call.1} parent=1 // pred_check_branch
      %39 = sbr.rel (0) target = $region13
    $region12: #{tpu_custom_call.1} parent=1 // pred_region
      %s41 = ssub.s32 32, 32
      %42 = vsyncadd [#allocation7], %s41
      %s44 = sshll.u32 [#allocation8], 4
      %s45 = int_to_ptr.vmem [resolvable:$true] %s44
      %47 = dma.hbm_to_vmem [thread:$0]  %s2, 32, %s45, [#allocation7]
    $region13: #{tpu_custom_call.1} parent=1 // pred_fallthru
      _
    // Predicated region
    $region14: #{tpu_custom_call.1} parent=1 // pred_check
      _
    $region15: #{tpu_custom_call.1} parent=1 // pred_check_branch
      %49 = sbr.rel (0) target = $region17
    $region16: #{tpu_custom_call.1} parent=1 // pred_region
      %s51 = ssub.s32 4096, 4096
      %52 = vsyncadd [#allocation10], %s51
      %s53 = sshll.u32 [#allocation9], 4
      %s54 = int_to_ptr.vmem [resolvable:$true] %s53
      %59 = dma.hbm_to_vmem [thread:$0]  %s3, 4096, %s54, [#allocation10], 128, 128, 8
    $region17: #{tpu_custom_call.1} parent=1 // pred_fallthru
      _
    // Predicated region
    $region18: #{tpu_custom_call.1} parent=1 // pred_check
      _
    $region19: #{tpu_custom_call.1} parent=1 // pred_check_branch
      %61 = sbr.rel (0) target = $region21
    $region20: #{tpu_custom_call.1} parent=1 // pred_region
      %s63 = ssub.s32 16, 16
      %64 = vsyncadd [#allocation10], %s63
      %s66 = sshll.u32 [#allocation11], 4
      %s67 = int_to_ptr.vmem [resolvable:$true] %s66
      %69 = dma.hbm_to_vmem [thread:$0]  %s4, 16, %s67, [#allocation10]
    $region21: #{tpu_custom_call.1} parent=1 // pred_fallthru
      _
    // Predicated region
    $region22: #{tpu_custom_call.1} parent=1 // pred_check
      _
    $region23: #{tpu_custom_call.1} parent=1 // pred_check_branch
      %71 = sbr.rel (0) target = $region25
    $region24: #{tpu_custom_call.1} parent=1 // pred_region
      %72 = dma.done [#allocation4], 32768
    $region25: #{tpu_custom_call.1} parent=1 // pred_fallthru
      _
    // Predicated region
    $region26: #{tpu_custom_call.1} parent=1 // pred_check
      _
    $region27: #{tpu_custom_call.1} parent=1 // pred_check_branch
      %74 = sbr.rel (0) target = $region29
    $region28: #{tpu_custom_call.1} parent=1 // pred_region
      %75 = dma.done [#allocation7], 65536
    $region29: #{tpu_custom_call.1} parent=1 // pred_fallthru
      _
    // Predicated region
    $region30: #{tpu_custom_call.1} parent=1 // pred_check
      _
    $region31: #{tpu_custom_call.1} parent=1 // pred_check_branch
      %77 = sbr.rel (0) target = $region33
    $region32: #{tpu_custom_call.1} parent=1 // pred_region
      %78 = dma.done [#allocation7], 32
    $region33: #{tpu_custom_call.1} parent=1 // pred_fallthru
      _
    // Predicated region
    $region34: #{tpu_custom_call.1} parent=1 // pred_check
      _
    $region35: #{tpu_custom_call.1} parent=1 // pred_check_branch
      %80 = sbr.rel (0) target = $region37
    $region36: #{tpu_custom_call.1} parent=1 // pred_region
      %81 = dma.done [#allocation10], 4096
    $region37: #{tpu_custom_call.1} parent=1 // pred_fallthru
      _
    // Predicated region
    $region38: #{tpu_custom_call.1} parent=1 // pred_check
      _
    $region39: #{tpu_custom_call.1} parent=1 // pred_check_branch
      %83 = sbr.rel (0) target = $region41
    $region40: #{tpu_custom_call.1} parent=1 // pred_region
      %84 = dma.done [#allocation10], 16
    $region41: #{tpu_custom_call.1} parent=1 // pred_fallthru
      _
    %p85 = scmp.eq.s32.totalorder 0, 0
    // Predicated region
    $region42: #{tpu_custom_call.1} parent=1 // pred_check
      %p86 = pneg %p85
    $region43: #{tpu_custom_call.1} parent=1 // pred_check_branch
      %88 = sbr.rel (%p86) target = $region45
    $region44: #{tpu_custom_call.1} parent=1 // pred_region
      %89 = vst [vmem:[#allocation2] sm:$0xff] 0.0
      %90 = vst [vmem:[#allocation2 + $0x8] sm:$0xff] 0.0
      %91 = vst [vmem:[#allocation2 + $0x10] sm:$0xff] 0.0
      %92 = vst [vmem:[#allocation2 + $0x18] sm:$0xff] 0.0
    $region45: #{tpu_custom_call.1} parent=1 // pred_fallthru
      _
    %v93 = vld [vmem:[#allocation2] sm:$0xff]
    %v94 = vld [vmem:[#allocation2 + $0x8] sm:$0xff]
    %v95 = vld [vmem:[#allocation2 + $0x10] sm:$0xff]
    %v96 = vld [vmem:[#allocation2 + $0x18] sm:$0xff]
    %v97 = vld [vmem:[#allocation3] sm:$0xff]
    %v98 = vld [vmem:[#allocation3 + $0x8] sm:$0xff]
    %v99 = vld [vmem:[#allocation3 + $0x10] sm:$0xff]
    %v100 = vld [vmem:[#allocation3 + $0x18] sm:$0xff]
    %v101 = vld [vmem:[#allocation3 + $0x20] sm:$0xff]
    %v102 = vld [vmem:[#allocation3 + $0x28] sm:$0xff]
    %v103 = vld [vmem:[#allocation3 + $0x30] sm:$0xff]
    %v104 = vld [vmem:[#allocation3 + $0x38] sm:$0xff]
    %v105 = vld [vmem:[#allocation3 + $0x40] sm:$0xff]
    %v106 = vld [vmem:[#allocation3 + $0x48] sm:$0xff]
    %v107 = vld [vmem:[#allocation3 + $0x50] sm:$0xff]
    %v108 = vld [vmem:[#allocation3 + $0x58] sm:$0xff]
    %v109 = vld [vmem:[#allocation3 + $0x60] sm:$0xff]
    %v110 = vld [vmem:[#allocation3 + $0x68] sm:$0xff]
    %v111 = vld [vmem:[#allocation3 + $0x70] sm:$0xff]
    %v112 = vld [vmem:[#allocation3 + $0x78] sm:$0xff]
    %v113 = vld [vmem:[#allocation3 + $0x80] sm:$0xff]
    %v114 = vld [vmem:[#allocation3 + $0x88] sm:$0xff]
    %v115 = vld [vmem:[#allocation3 + $0x90] sm:$0xff]
    %v116 = vld [vmem:[#allocation3 + $0x98] sm:$0xff]
    %v117 = vld [vmem:[#allocation3 + $0xa0] sm:$0xff]
    %v118 = vld [vmem:[#allocation3 + $0xa8] sm:$0xff]
    %v119 = vld [vmem:[#allocation3 + $0xb0] sm:$0xff]
    %v120 = vld [vmem:[#allocation3 + $0xb8] sm:$0xff]
    %v121 = vld [vmem:[#allocation3 + $0xc0] sm:$0xff]
    %v122 = vld [vmem:[#allocation3 + $0xc8] sm:$0xff]
    %v123 = vld [vmem:[#allocation3 + $0xd0] sm:$0xff]
    %v124 = vld [vmem:[#allocation3 + $0xd8] sm:$0xff]
    %v125 = vld [vmem:[#allocation3 + $0xe0] sm:$0xff]
    %v126 = vld [vmem:[#allocation3 + $0xe8] sm:$0xff]
    %v127 = vld [vmem:[#allocation3 + $0xf0] sm:$0xff]
    %v128 = vld [vmem:[#allocation3 + $0xf8] sm:$0xff]
    %v129 = vld [vmem:[#allocation3 + $0x100] sm:$0xff]
    %v130 = vld [vmem:[#allocation3 + $0x108] sm:$0xff]
    %v131 = vld [vmem:[#allocation3 + $0x110] sm:$0xff]
    %v132 = vld [vmem:[#allocation3 + $0x118] sm:$0xff]
    %v133 = vld [vmem:[#allocation3 + $0x120] sm:$0xff]
    %v134 = vld [vmem:[#allocation3 + $0x128] sm:$0xff]
    %v135 = vld [vmem:[#allocation3 + $0x130] sm:$0xff]
    %v136 = vld [vmem:[#allocation3 + $0x138] sm:$0xff]
    %v137 = vld [vmem:[#allocation3 + $0x140] sm:$0xff]
    %v138 = vld [vmem:[#allocation3 + $0x148] sm:$0xff]
    %v139 = vld [vmem:[#allocation3 + $0x150] sm:$0xff]
    %v140 = vld [vmem:[#allocation3 + $0x158] sm:$0xff]
    %v141 = vld [vmem:[#allocation3 + $0x160] sm:$0xff]
    %v142 = vld [vmem:[#allocation3 + $0x168] sm:$0xff]
    %v143 = vld [vmem:[#allocation3 + $0x170] sm:$0xff]
    %v144 = vld [vmem:[#allocation3 + $0x178] sm:$0xff]
    %v145 = vld [vmem:[#allocation3 + $0x180] sm:$0xff]
    %v146 = vld [vmem:[#allocation3 + $0x188] sm:$0xff]
    %v147 = vld [vmem:[#allocation3 + $0x190] sm:$0xff]
    %v148 = vld [vmem:[#allocation3 + $0x198] sm:$0xff]
    %v149 = vld [vmem:[#allocation3 + $0x1a0] sm:$0xff]
    %v150 = vld [vmem:[#allocation3 + $0x1a8] sm:$0xff]
    %v151 = vld [vmem:[#allocation3 + $0x1b0] sm:$0xff]
    %v152 = vld [vmem:[#allocation3 + $0x1b8] sm:$0xff]
    %v153 = vld [vmem:[#allocation3 + $0x1c0] sm:$0xff]
    %v154 = vld [vmem:[#allocation3 + $0x1c8] sm:$0xff]
    %v155 = vld [vmem:[#allocation3 + $0x1d0] sm:$0xff]
    %v156 = vld [vmem:[#allocation3 + $0x1d8] sm:$0xff]
    %v157 = vld [vmem:[#allocation3 + $0x1e0] sm:$0xff]
    %v158 = vld [vmem:[#allocation3 + $0x1e8] sm:$0xff]
    %v159 = vld [vmem:[#allocation3 + $0x1f0] sm:$0xff]
    %v160 = vld [vmem:[#allocation3 + $0x1f8] sm:$0xff]
    %v161 = vld [vmem:[#allocation3 + $0x200] sm:$0xff]
    %v162 = vld [vmem:[#allocation3 + $0x208] sm:$0xff]
    %v163 = vld [vmem:[#allocation3 + $0x210] sm:$0xff]
    %v164 = vld [vmem:[#allocation3 + $0x218] sm:$0xff]
    %v165 = vld [vmem:[#allocation3 + $0x220] sm:$0xff]
    %v166 = vld [vmem:[#allocation3 + $0x228] sm:$0xff]
    %v167 = vld [vmem:[#allocation3 + $0x230] sm:$0xff]
    %v168 = vld [vmem:[#allocation3 + $0x238] sm:$0xff]
    %v169 = vld [vmem:[#allocation3 + $0x240] sm:$0xff]
    %v170 = vld [vmem:[#allocation3 + $0x248] sm:$0xff]
    %v171 = vld [vmem:[#allocation3 + $0x250] sm:$0xff]
    %v172 = vld [vmem:[#allocation3 + $0x258] sm:$0xff]
    %v173 = vld [vmem:[#allocation3 + $0x260] sm:$0xff]
    %v174 = vld [vmem:[#allocation3 + $0x268] sm:$0xff]
    %v175 = vld [vmem:[#allocation3 + $0x270] sm:$0xff]
    %v176 = vld [vmem:[#allocation3 + $0x278] sm:$0xff]
    %v177 = vld [vmem:[#allocation3 + $0x280] sm:$0xff]
    %v178 = vld [vmem:[#allocation3 + $0x288] sm:$0xff]
    %v179 = vld [vmem:[#allocation3 + $0x290] sm:$0xff]
    %v180 = vld [vmem:[#allocation3 + $0x298] sm:$0xff]
    %v181 = vld [vmem:[#allocation3 + $0x2a0] sm:$0xff]
    %v182 = vld [vmem:[#allocation3 + $0x2a8] sm:$0xff]
    %v183 = vld [vmem:[#allocation3 + $0x2b0] sm:$0xff]
    %v184 = vld [vmem:[#allocation3 + $0x2b8] sm:$0xff]
    %v185 = vld [vmem:[#allocation3 + $0x2c0] sm:$0xff]
    %v186 = vld [vmem:[#allocation3 + $0x2c8] sm:$0xff]
    %v187 = vld [vmem:[#allocation3 + $0x2d0] sm:$0xff]
    %v188 = vld [vmem:[#allocation3 + $0x2d8] sm:$0xff]
    %v189 = vld [vmem:[#allocation3 + $0x2e0] sm:$0xff]
    %v190 = vld [vmem:[#allocation3 + $0x2e8] sm:$0xff]
    %v191 = vld [vmem:[#allocation3 + $0x2f0] sm:$0xff]
    %v192 = vld [vmem:[#allocation3 + $0x2f8] sm:$0xff]
    %v193 = vld [vmem:[#allocation3 + $0x300] sm:$0xff]
    %v194 = vld [vmem:[#allocation3 + $0x308] sm:$0xff]
    %v195 = vld [vmem:[#allocation3 + $0x310] sm:$0xff]
    %v196 = vld [vmem:[#allocation3 + $0x318] sm:$0xff]
    %v197 = vld [vmem:[#allocation3 + $0x320] sm:$0xff]
    %v198 = vld [vmem:[#allocation3 + $0x328] sm:$0xff]
    %v199 = vld [vmem:[#allocation3 + $0x330] sm:$0xff]
    %v200 = vld [vmem:[#allocation3 + $0x338] sm:$0xff]
    %v201 = vld [vmem:[#allocation3 + $0x340] sm:$0xff]
    %v202 = vld [vmem:[#allocation3 + $0x348] sm:$0xff]
    %v203 = vld [vmem:[#allocation3 + $0x350] sm:$0xff]
    %v204 = vld [vmem:[#allocation3 + $0x358] sm:$0xff]
    %v205 = vld [vmem:[#allocation3 + $0x360] sm:$0xff]
    %v206 = vld [vmem:[#allocation3 + $0x368] sm:$0xff]
    %v207 = vld [vmem:[#allocation3 + $0x370] sm:$0xff]
    %v208 = vld [vmem:[#allocation3 + $0x378] sm:$0xff]
    %v209 = vld [vmem:[#allocation3 + $0x380] sm:$0xff]
    %v210 = vld [vmem:[#allocation3 + $0x388] sm:$0xff]
    %v211 = vld [vmem:[#allocation3 + $0x390] sm:$0xff]
    %v212 = vld [vmem:[#allocation3 + $0x398] sm:$0xff]
    %v213 = vld [vmem:[#allocation3 + $0x3a0] sm:$0xff]
    %v214 = vld [vmem:[#allocation3 + $0x3a8] sm:$0xff]
    %v215 = vld [vmem:[#allocation3 + $0x3b0] sm:$0xff]
    %v216 = vld [vmem:[#allocation3 + $0x3b8] sm:$0xff]
    %v217 = vld [vmem:[#allocation3 + $0x3c0] sm:$0xff]
    %v218 = vld [vmem:[#allocation3 + $0x3c8] sm:$0xff]
    %v219 = vld [vmem:[#allocation3 + $0x3d0] sm:$0xff]
    %v220 = vld [vmem:[#allocation3 + $0x3d8] sm:$0xff]
    %v221 = vld [vmem:[#allocation3 + $0x3e0] sm:$0xff]
    %v222 = vld [vmem:[#allocation3 + $0x3e8] sm:$0xff]
    %v223 = vld [vmem:[#allocation3 + $0x3f0] sm:$0xff]
    %v224 = vld [vmem:[#allocation3 + $0x3f8] sm:$0xff]
    %v225 = vld [vmem:[#allocation3 + $0x400] sm:$0xff]
    %v226 = vld [vmem:[#allocation3 + $0x408] sm:$0xff]
    %v227 = vld [vmem:[#allocation3 + $0x410] sm:$0xff]
    %v228 = vld [vmem:[#allocation3 + $0x418] sm:$0xff]
    %v229 = vld [vmem:[#allocation3 + $0x420] sm:$0xff]
    %v230 = vld [vmem:[#allocation3 + $0x428] sm:$0xff]
    %v231 = vld [vmem:[#allocation3 + $0x430] sm:$0xff]
    %v232 = vld [vmem:[#allocation3 + $0x438] sm:$0xff]
    %v233 = vld [vmem:[#allocation3 + $0x440] sm:$0xff]
    %v234 = vld [vmem:[#allocation3 + $0x448] sm:$0xff]
    %v235 = vld [vmem:[#allocation3 + $0x450] sm:$0xff]
    %v236 = vld [vmem:[#allocation3 + $0x458] sm:$0xff]
    %v237 = vld [vmem:[#allocation3 + $0x460] sm:$0xff]
    %v238 = vld [vmem:[#allocation3 + $0x468] sm:$0xff]
    %v239 = vld [vmem:[#allocation3 + $0x470] sm:$0xff]
    %v240 = vld [vmem:[#allocation3 + $0x478] sm:$0xff]
    %v241 = vld [vmem:[#allocation3 + $0x480] sm:$0xff]
    %v242 = vld [vmem:[#allocation3 + $0x488] sm:$0xff]
    %v243 = vld [vmem:[#allocation3 + $0x490] sm:$0xff]
    %v244 = vld [vmem:[#allocation3 + $0x498] sm:$0xff]
    %v245 = vld [vmem:[#allocation3 + $0x4a0] sm:$0xff]
    %v246 = vld [vmem:[#allocation3 + $0x4a8] sm:$0xff]
    %v247 = vld [vmem:[#allocation3 + $0x4b0] sm:$0xff]
    %v248 = vld [vmem:[#allocation3 + $0x4b8] sm:$0xff]
    %v249 = vld [vmem:[#allocation3 + $0x4c0] sm:$0xff]
    %v250 = vld [vmem:[#allocation3 + $0x4c8] sm:$0xff]
    %v251 = vld [vmem:[#allocation3 + $0x4d0] sm:$0xff]
    %v252 = vld [vmem:[#allocation3 + $0x4d8] sm:$0xff]
    %v253 = vld [vmem:[#allocation3 + $0x4e0] sm:$0xff]
    %v254 = vld [vmem:[#allocation3 + $0x4e8] sm:$0xff]
    %v255 = vld [vmem:[#allocation3 + $0x4f0] sm:$0xff]
    %v256 = vld [vmem:[#allocation3 + $0x4f8] sm:$0xff]
    %v257 = vld [vmem:[#allocation3 + $0x500] sm:$0xff]
    %v258 = vld [vmem:[#allocation3 + $0x508] sm:$0xff]
    %v259 = vld [vmem:[#allocation3 + $0x510] sm:$0xff]
    %v260 = vld [vmem:[#allocation3 + $0x518] sm:$0xff]
    %v261 = vld [vmem:[#allocation3 + $0x520] sm:$0xff]
    %v262 = vld [vmem:[#allocation3 + $0x528] sm:$0xff]
    %v263 = vld [vmem:[#allocation3 + $0x530] sm:$0xff]
    %v264 = vld [vmem:[#allocation3 + $0x538] sm:$0xff]
    %v265 = vld [vmem:[#allocation3 + $0x540] sm:$0xff]
    %v266 = vld [vmem:[#allocation3 + $0x548] sm:$0xff]
    %v267 = vld [vmem:[#allocation3 + $0x550] sm:$0xff]
    %v268 = vld [vmem:[#allocation3 + $0x558] sm:$0xff]
    %v269 = vld [vmem:[#allocation3 + $0x560] sm:$0xff]
    %v270 = vld [vmem:[#allocation3 + $0x568] sm:$0xff]
    %v271 = vld [vmem:[#allocation3 + $0x570] sm:$0xff]
    %v272 = vld [vmem:[#allocation3 + $0x578] sm:$0xff]
    %v273 = vld [vmem:[#allocation3 + $0x580] sm:$0xff]
    %v274 = vld [vmem:[#allocation3 + $0x588] sm:$0xff]
    %v275 = vld [vmem:[#allocation3 + $0x590] sm:$0xff]
    %v276 = vld [vmem:[#allocation3 + $0x598] sm:$0xff]
    %v277 = vld [vmem:[#allocation3 + $0x5a0] sm:$0xff]
    %v278 = vld [vmem:[#allocation3 + $0x5a8] sm:$0xff]
    %v279 = vld [vmem:[#allocation3 + $0x5b0] sm:$0xff]
    %v280 = vld [vmem:[#allocation3 + $0x5b8] sm:$0xff]
    %v281 = vld [vmem:[#allocation3 + $0x5c0] sm:$0xff]
    %v282 = vld [vmem:[#allocation3 + $0x5c8] sm:$0xff]
    %v283 = vld [vmem:[#allocation3 + $0x5d0] sm:$0xff]
    %v284 = vld [vmem:[#allocation3 + $0x5d8] sm:$0xff]
    %v285 = vld [vmem:[#allocation3 + $0x5e0] sm:$0xff]
    %v286 = vld [vmem:[#allocation3 + $0x5e8] sm:$0xff]
    %v287 = vld [vmem:[#allocation3 + $0x5f0] sm:$0xff]
    %v288 = vld [vmem:[#allocation3 + $0x5f8] sm:$0xff]
    %v289 = vld [vmem:[#allocation3 + $0x600] sm:$0xff]
    %v290 = vld [vmem:[#allocation3 + $0x608] sm:$0xff]
    %v291 = vld [vmem:[#allocation3 + $0x610] sm:$0xff]
    %v292 = vld [vmem:[#allocation3 + $0x618] sm:$0xff]
    %v293 = vld [vmem:[#allocation3 + $0x620] sm:$0xff]
    %v294 = vld [vmem:[#allocation3 + $0x628] sm:$0xff]
    %v295 = vld [vmem:[#allocation3 + $0x630] sm:$0xff]
    %v296 = vld [vmem:[#allocation3 + $0x638] sm:$0xff]
    %v297 = vld [vmem:[#allocation3 + $0x640] sm:$0xff]
    %v298 = vld [vmem:[#allocation3 + $0x648] sm:$0xff]
    %v299 = vld [vmem:[#allocation3 + $0x650] sm:$0xff]
    %v300 = vld [vmem:[#allocation3 + $0x658] sm:$0xff]
    %v301 = vld [vmem:[#allocation3 + $0x660] sm:$0xff]
    %v302 = vld [vmem:[#allocation3 + $0x668] sm:$0xff]
    %v303 = vld [vmem:[#allocation3 + $0x670] sm:$0xff]
    %v304 = vld [vmem:[#allocation3 + $0x678] sm:$0xff]
    %v305 = vld [vmem:[#allocation3 + $0x680] sm:$0xff]
    %v306 = vld [vmem:[#allocation3 + $0x688] sm:$0xff]
    %v307 = vld [vmem:[#allocation3 + $0x690] sm:$0xff]
    %v308 = vld [vmem:[#allocation3 + $0x698] sm:$0xff]
    %v309 = vld [vmem:[#allocation3 + $0x6a0] sm:$0xff]
    %v310 = vld [vmem:[#allocation3 + $0x6a8] sm:$0xff]
    %v311 = vld [vmem:[#allocation3 + $0x6b0] sm:$0xff]
    %v312 = vld [vmem:[#allocation3 + $0x6b8] sm:$0xff]
    %v313 = vld [vmem:[#allocation3 + $0x6c0] sm:$0xff]
    %v314 = vld [vmem:[#allocation3 + $0x6c8] sm:$0xff]
    %v315 = vld [vmem:[#allocation3 + $0x6d0] sm:$0xff]
    %v316 = vld [vmem:[#allocation3 + $0x6d8] sm:$0xff]
    %v317 = vld [vmem:[#allocation3 + $0x6e0] sm:$0xff]
    %v318 = vld [vmem:[#allocation3 + $0x6e8] sm:$0xff]
    %v319 = vld [vmem:[#allocation3 + $0x6f0] sm:$0xff]
    %v320 = vld [vmem:[#allocation3 + $0x6f8] sm:$0xff]
    %v321 = vld [vmem:[#allocation3 + $0x700] sm:$0xff]
    %v322 = vld [vmem:[#allocation3 + $0x708] sm:$0xff]
    %v323 = vld [vmem:[#allocation3 + $0x710] sm:$0xff]
    %v324 = vld [vmem:[#allocation3 + $0x718] sm:$0xff]
    %v325 = vld [vmem:[#allocation3 + $0x720] sm:$0xff]
    %v326 = vld [vmem:[#allocation3 + $0x728] sm:$0xff]
    %v327 = vld [vmem:[#allocation3 + $0x730] sm:$0xff]
    %v328 = vld [vmem:[#allocation3 + $0x738] sm:$0xff]
    %v329 = vld [vmem:[#allocation3 + $0x740] sm:$0xff]
    %v330 = vld [vmem:[#allocation3 + $0x748] sm:$0xff]
    %v331 = vld [vmem:[#allocation3 + $0x750] sm:$0xff]
    %v332 = vld [vmem:[#allocation3 + $0x758] sm:$0xff]
    %v333 = vld [vmem:[#allocation3 + $0x760] sm:$0xff]
    %v334 = vld [vmem:[#allocation3 + $0x768] sm:$0xff]
    %v335 = vld [vmem:[#allocation3 + $0x770] sm:$0xff]
    %v336 = vld [vmem:[#allocation3 + $0x778] sm:$0xff]
    %v337 = vld [vmem:[#allocation3 + $0x780] sm:$0xff]
    %v338 = vld [vmem:[#allocation3 + $0x788] sm:$0xff]
    %v339 = vld [vmem:[#allocation3 + $0x790] sm:$0xff]
    %v340 = vld [vmem:[#allocation3 + $0x798] sm:$0xff]
    %v341 = vld [vmem:[#allocation3 + $0x7a0] sm:$0xff]
    %v342 = vld [vmem:[#allocation3 + $0x7a8] sm:$0xff]
    %v343 = vld [vmem:[#allocation3 + $0x7b0] sm:$0xff]
    %v344 = vld [vmem:[#allocation3 + $0x7b8] sm:$0xff]
    %v345 = vld [vmem:[#allocation3 + $0x7c0] sm:$0xff]
    %v346 = vld [vmem:[#allocation3 + $0x7c8] sm:$0xff]
    %v347 = vld [vmem:[#allocation3 + $0x7d0] sm:$0xff]
    %v348 = vld [vmem:[#allocation3 + $0x7d8] sm:$0xff]
    %v349 = vld [vmem:[#allocation3 + $0x7e0] sm:$0xff]
    %v350 = vld [vmem:[#allocation3 + $0x7e8] sm:$0xff]
    %v351 = vld [vmem:[#allocation3 + $0x7f0] sm:$0xff]
    %v352 = vld [vmem:[#allocation3 + $0x7f8] sm:$0xff]
    %v353 = vadd.f32 %v97, %v113
    %v354 = vadd.f32 %v353, %v129
    %v355 = vadd.f32 %v354, %v145
    %v356 = vadd.f32 %v355, %v161
    %v357 = vadd.f32 %v356, %v177
    %v358 = vadd.f32 %v357, %v193
    %v359 = vadd.f32 %v358, %v209
    %v360 = vrot.slane %v359, 4
    %v361 = vadd.f32 %v359, %v360
    %v362 = vrot.slane %v361, 2
    %v363 = vadd.f32 %v361, %v362
    %v364 = vrot.slane %v363, 1
    %v365 = vadd.f32 %v363, %v364
    %v366 = vadd.f32 %v98, %v114
    %v367 = vadd.f32 %v366, %v130
    %v368 = vadd.f32 %v367, %v146
    %v369 = vadd.f32 %v368, %v162
    %v370 = vadd.f32 %v369, %v178
    %v371 = vadd.f32 %v370, %v194
    %v372 = vadd.f32 %v371, %v210
    %v373 = vrot.slane %v372, 4
    %v374 = vadd.f32 %v372, %v373
    %v375 = vrot.slane %v374, 2
    %v376 = vadd.f32 %v374, %v375
    %v377 = vrot.slane %v376, 1
    %v378 = vadd.f32 %v376, %v377
    %v379 = vadd.f32 %v99, %v115
    %v380 = vadd.f32 %v379, %v131
    %v381 = vadd.f32 %v380, %v147
    %v382 = vadd.f32 %v381, %v163
    %v383 = vadd.f32 %v382, %v179
    %v384 = vadd.f32 %v383, %v195
    %v385 = vadd.f32 %v384, %v211
    %v386 = vrot.slane %v385, 4
    %v387 = vadd.f32 %v385, %v386
    %v388 = vrot.slane %v387, 2
    %v389 = vadd.f32 %v387, %v388
    %v390 = vrot.slane %v389, 1
    %v391 = vadd.f32 %v389, %v390
    %v392 = vadd.f32 %v100, %v116
    %v393 = vadd.f32 %v392, %v132
    %v394 = vadd.f32 %v393, %v148
    %v395 = vadd.f32 %v394, %v164
    %v396 = vadd.f32 %v395, %v180
    %v397 = vadd.f32 %v396, %v196
    %v398 = vadd.f32 %v397, %v212
    %v399 = vrot.slane %v398, 4
    %v400 = vadd.f32 %v398, %v399
    %v401 = vrot.slane %v400, 2
    %v402 = vadd.f32 %v400, %v401
    %v403 = vrot.slane %v402, 1
    %v404 = vadd.f32 %v402, %v403
    %v405 = vadd.f32 %v101, %v117
    %v406 = vadd.f32 %v405, %v133
    %v407 = vadd.f32 %v406, %v149
    %v408 = vadd.f32 %v407, %v165
    %v409 = vadd.f32 %v408, %v181
    %v410 = vadd.f32 %v409, %v197
    %v411 = vadd.f32 %v410, %v213
    %v412 = vrot.slane %v411, 4
    %v413 = vadd.f32 %v411, %v412
    %v414 = vrot.slane %v413, 2
    %v415 = vadd.f32 %v413, %v414
    %v416 = vrot.slane %v415, 1
    %v417 = vadd.f32 %v415, %v416
    %v418 = vadd.f32 %v102, %v118
    %v419 = vadd.f32 %v418, %v134
    %v420 = vadd.f32 %v419, %v150
    %v421 = vadd.f32 %v420, %v166
    %v422 = vadd.f32 %v421, %v182
    %v423 = vadd.f32 %v422, %v198
    %v424 = vadd.f32 %v423, %v214
    %v425 = vrot.slane %v424, 4
    %v426 = vadd.f32 %v424, %v425
    %v427 = vrot.slane %v426, 2
    %v428 = vadd.f32 %v426, %v427
    %v429 = vrot.slane %v428, 1
    %v430 = vadd.f32 %v428, %v429
    %v431 = vadd.f32 %v103, %v119
    %v432 = vadd.f32 %v431, %v135
    %v433 = vadd.f32 %v432, %v151
    %v434 = vadd.f32 %v433, %v167
    %v435 = vadd.f32 %v434, %v183
    %v436 = vadd.f32 %v435, %v199
    %v437 = vadd.f32 %v436, %v215
    %v438 = vrot.slane %v437, 4
    %v439 = vadd.f32 %v437, %v438
    %v440 = vrot.slane %v439, 2
    %v441 = vadd.f32 %v439, %v440
    %v442 = vrot.slane %v441, 1
    %v443 = vadd.f32 %v441, %v442
    %v444 = vadd.f32 %v104, %v120
    %v445 = vadd.f32 %v444, %v136
    %v446 = vadd.f32 %v445, %v152
    %v447 = vadd.f32 %v446, %v168
    %v448 = vadd.f32 %v447, %v184
    %v449 = vadd.f32 %v448, %v200
    %v450 = vadd.f32 %v449, %v216
    %v451 = vrot.slane %v450, 4
    %v452 = vadd.f32 %v450, %v451
    %v453 = vrot.slane %v452, 2
    %v454 = vadd.f32 %v452, %v453
    %v455 = vrot.slane %v454, 1
    %v456 = vadd.f32 %v454, %v455
    %v457 = vadd.f32 %v105, %v121
    %v458 = vadd.f32 %v457, %v137
    %v459 = vadd.f32 %v458, %v153
    %v460 = vadd.f32 %v459, %v169
    %v461 = vadd.f32 %v460, %v185
    %v462 = vadd.f32 %v461, %v201
    %v463 = vadd.f32 %v462, %v217
    %v464 = vrot.slane %v463, 4
    %v465 = vadd.f32 %v463, %v464
    %v466 = vrot.slane %v465, 2
    %v467 = vadd.f32 %v465, %v466
    %v468 = vrot.slane %v467, 1
    %v469 = vadd.f32 %v467, %v468
    %v470 = vadd.f32 %v106, %v122
    %v471 = vadd.f32 %v470, %v138
    %v472 = vadd.f32 %v471, %v154
    %v473 = vadd.f32 %v472, %v170
    %v474 = vadd.f32 %v473, %v186
    %v475 = vadd.f32 %v474, %v202
    %v476 = vadd.f32 %v475, %v218
    %v477 = vrot.slane %v476, 4
    %v478 = vadd.f32 %v476, %v477
    %v479 = vrot.slane %v478, 2
    %v480 = vadd.f32 %v478, %v479
    %v481 = vrot.slane %v480, 1
    %v482 = vadd.f32 %v480, %v481
    %v483 = vadd.f32 %v107, %v123
    %v484 = vadd.f32 %v483, %v139
    %v485 = vadd.f32 %v484, %v155
    %v486 = vadd.f32 %v485, %v171
    %v487 = vadd.f32 %v486, %v187
    %v488 = vadd.f32 %v487, %v203
    %v489 = vadd.f32 %v488, %v219
    %v490 = vrot.slane %v489, 4
    %v491 = vadd.f32 %v489, %v490
    %v492 = vrot.slane %v491, 2
    %v493 = vadd.f32 %v491, %v492
    %v494 = vrot.slane %v493, 1
    %v495 = vadd.f32 %v493, %v494
    %v496 = vadd.f32 %v108, %v124
    %v497 = vadd.f32 %v496, %v140
    %v498 = vadd.f32 %v497, %v156
    %v499 = vadd.f32 %v498, %v172
    %v500 = vadd.f32 %v499, %v188
    %v501 = vadd.f32 %v500, %v204
    %v502 = vadd.f32 %v501, %v220
    %v503 = vrot.slane %v502, 4
    %v504 = vadd.f32 %v502, %v503
    %v505 = vrot.slane %v504, 2
    %v506 = vadd.f32 %v504, %v505
    %v507 = vrot.slane %v506, 1
    %v508 = vadd.f32 %v506, %v507
    %v509 = vadd.f32 %v109, %v125
    %v510 = vadd.f32 %v509, %v141
    %v511 = vadd.f32 %v510, %v157
    %v512 = vadd.f32 %v511, %v173
    %v513 = vadd.f32 %v512, %v189
    %v514 = vadd.f32 %v513, %v205
    %v515 = vadd.f32 %v514, %v221
    %v516 = vrot.slane %v515, 4
    %v517 = vadd.f32 %v515, %v516
    %v518 = vrot.slane %v517, 2
    %v519 = vadd.f32 %v517, %v518
    %v520 = vrot.slane %v519, 1
    %v521 = vadd.f32 %v519, %v520
    %v522 = vadd.f32 %v110, %v126
    %v523 = vadd.f32 %v522, %v142
    %v524 = vadd.f32 %v523, %v158
    %v525 = vadd.f32 %v524, %v174
    %v526 = vadd.f32 %v525, %v190
    %v527 = vadd.f32 %v526, %v206
    %v528 = vadd.f32 %v527, %v222
    %v529 = vrot.slane %v528, 4
    %v530 = vadd.f32 %v528, %v529
    %v531 = vrot.slane %v530, 2
    %v532 = vadd.f32 %v530, %v531
    %v533 = vrot.slane %v532, 1
    %v534 = vadd.f32 %v532, %v533
    %v535 = vadd.f32 %v111, %v127
    %v536 = vadd.f32 %v535, %v143
    %v537 = vadd.f32 %v536, %v159
    %v538 = vadd.f32 %v537, %v175
    %v539 = vadd.f32 %v538, %v191
    %v540 = vadd.f32 %v539, %v207
    %v541 = vadd.f32 %v540, %v223
    %v542 = vrot.slane %v541, 4
    %v543 = vadd.f32 %v541, %v542
    %v544 = vrot.slane %v543, 2
    %v545 = vadd.f32 %v543, %v544
    %v546 = vrot.slane %v545, 1
    %v547 = vadd.f32 %v545, %v546
    %v548 = vadd.f32 %v112, %v128
    %v549 = vadd.f32 %v548, %v144
    %v550 = vadd.f32 %v549, %v160
    %v551 = vadd.f32 %v550, %v176
    %v552 = vadd.f32 %v551, %v192
    %v553 = vadd.f32 %v552, %v208
    %v554 = vadd.f32 %v553, %v224
    %v555 = vrot.slane %v554, 4
    %v556 = vadd.f32 %v554, %v555
    %v557 = vrot.slane %v556, 2
    %v558 = vadd.f32 %v556, %v557
    %v559 = vrot.slane %v558, 1
    %v560 = vadd.f32 %v558, %v559
    %v561 = vadd.f32 %v225, %v241
    %v562 = vadd.f32 %v561, %v257
    %v563 = vadd.f32 %v562, %v273
    %v564 = vadd.f32 %v563, %v289
    %v565 = vadd.f32 %v564, %v305
    %v566 = vadd.f32 %v565, %v321
    %v567 = vadd.f32 %v566, %v337
    %v568 = vrot.slane %v567, 4
    %v569 = vadd.f32 %v567, %v568
    %v570 = vrot.slane %v569, 2
    %v571 = vadd.f32 %v569, %v570
    %v572 = vrot.slane %v571, 1
    %v573 = vadd.f32 %v571, %v572
    %v574 = vadd.f32 %v226, %v242
    %v575 = vadd.f32 %v574, %v258
    %v576 = vadd.f32 %v575, %v274
    %v577 = vadd.f32 %v576, %v290
    %v578 = vadd.f32 %v577, %v306
    %v579 = vadd.f32 %v578, %v322
    %v580 = vadd.f32 %v579, %v338
    %v581 = vrot.slane %v580, 4
    %v582 = vadd.f32 %v580, %v581
    %v583 = vrot.slane %v582, 2
    %v584 = vadd.f32 %v582, %v583
    %v585 = vrot.slane %v584, 1
    %v586 = vadd.f32 %v584, %v585
    %v587 = vadd.f32 %v227, %v243
    %v588 = vadd.f32 %v587, %v259
    %v589 = vadd.f32 %v588, %v275
    %v590 = vadd.f32 %v589, %v291
    %v591 = vadd.f32 %v590, %v307
    %v592 = vadd.f32 %v591, %v323
    %v593 = vadd.f32 %v592, %v339
    %v594 = vrot.slane %v593, 4
    %v595 = vadd.f32 %v593, %v594
    %v596 = vrot.slane %v595, 2
    %v597 = vadd.f32 %v595, %v596
    %v598 = vrot.slane %v597, 1
    %v599 = vadd.f32 %v597, %v598
    %v600 = vadd.f32 %v228, %v244
    %v601 = vadd.f32 %v600, %v260
    %v602 = vadd.f32 %v601, %v276
    %v603 = vadd.f32 %v602, %v292
    %v604 = vadd.f32 %v603, %v308
    %v605 = vadd.f32 %v604, %v324
    %v606 = vadd.f32 %v605, %v340
    %v607 = vrot.slane %v606, 4
    %v608 = vadd.f32 %v606, %v607
    %v609 = vrot.slane %v608, 2
    %v610 = vadd.f32 %v608, %v609
    %v611 = vrot.slane %v610, 1
    %v612 = vadd.f32 %v610, %v611
    %v613 = vadd.f32 %v229, %v245
    %v614 = vadd.f32 %v613, %v261
    %v615 = vadd.f32 %v614, %v277
    %v616 = vadd.f32 %v615, %v293
    %v617 = vadd.f32 %v616, %v309
    %v618 = vadd.f32 %v617, %v325
    %v619 = vadd.f32 %v618, %v341
    %v620 = vrot.slane %v619, 4
    %v621 = vadd.f32 %v619, %v620
    %v622 = vrot.slane %v621, 2
    %v623 = vadd.f32 %v621, %v622
    %v624 = vrot.slane %v623, 1
    %v625 = vadd.f32 %v623, %v624
    %v626 = vadd.f32 %v230, %v246
    %v627 = vadd.f32 %v626, %v262
    %v628 = vadd.f32 %v627, %v278
    %v629 = vadd.f32 %v628, %v294
    %v630 = vadd.f32 %v629, %v310
    %v631 = vadd.f32 %v630, %v326
    %v632 = vadd.f32 %v631, %v342
    %v633 = vrot.slane %v632, 4
    %v634 = vadd.f32 %v632, %v633
    %v635 = vrot.slane %v634, 2
    %v636 = vadd.f32 %v634, %v635
    %v637 = vrot.slane %v636, 1
    %v638 = vadd.f32 %v636, %v637
    %v639 = vadd.f32 %v231, %v247
    %v640 = vadd.f32 %v639, %v263
    %v641 = vadd.f32 %v640, %v279
    %v642 = vadd.f32 %v641, %v295
    %v643 = vadd.f32 %v642, %v311
    %v644 = vadd.f32 %v643, %v327
    %v645 = vadd.f32 %v644, %v343
    %v646 = vrot.slane %v645, 4
    %v647 = vadd.f32 %v645, %v646
    %v648 = vrot.slane %v647, 2
    %v649 = vadd.f32 %v647, %v648
    %v650 = vrot.slane %v649, 1
    %v651 = vadd.f32 %v649, %v650
    %v652 = vadd.f32 %v232, %v248
    %v653 = vadd.f32 %v652, %v264
    %v654 = vadd.f32 %v653, %v280
    %v655 = vadd.f32 %v654, %v296
    %v656 = vadd.f32 %v655, %v312
    %v657 = vadd.f32 %v656, %v328
    %v658 = vadd.f32 %v657, %v344
    %v659 = vrot.slane %v658, 4
    %v660 = vadd.f32 %v658, %v659
    %v661 = vrot.slane %v660, 2
    %v662 = vadd.f32 %v660, %v661
    %v663 = vrot.slane %v662, 1
    %v664 = vadd.f32 %v662, %v663
    %v665 = vadd.f32 %v233, %v249
    %v666 = vadd.f32 %v665, %v265
    %v667 = vadd.f32 %v666, %v281
    %v668 = vadd.f32 %v667, %v297
    %v669 = vadd.f32 %v668, %v313
    %v670 = vadd.f32 %v669, %v329
    %v671 = vadd.f32 %v670, %v345
    %v672 = vrot.slane %v671, 4
    %v673 = vadd.f32 %v671, %v672
    %v674 = vrot.slane %v673, 2
    %v675 = vadd.f32 %v673, %v674
    %v676 = vrot.slane %v675, 1
    %v677 = vadd.f32 %v675, %v676
    %v678 = vadd.f32 %v234, %v250
    %v679 = vadd.f32 %v678, %v266
    %v680 = vadd.f32 %v679, %v282
    %v681 = vadd.f32 %v680, %v298
    %v682 = vadd.f32 %v681, %v314
    %v683 = vadd.f32 %v682, %v330
    %v684 = vadd.f32 %v683, %v346
    %v685 = vrot.slane %v684, 4
    %v686 = vadd.f32 %v684, %v685
    %v687 = vrot.slane %v686, 2
    %v688 = vadd.f32 %v686, %v687
    %v689 = vrot.slane %v688, 1
    %v690 = vadd.f32 %v688, %v689
    %v691 = vadd.f32 %v235, %v251
    %v692 = vadd.f32 %v691, %v267
    %v693 = vadd.f32 %v692, %v283
    %v694 = vadd.f32 %v693, %v299
    %v695 = vadd.f32 %v694, %v315
    %v696 = vadd.f32 %v695, %v331
    %v697 = vadd.f32 %v696, %v347
    %v698 = vrot.slane %v697, 4
    %v699 = vadd.f32 %v697, %v698
    %v700 = vrot.slane %v699, 2
    %v701 = vadd.f32 %v699, %v700
    %v702 = vrot.slane %v701, 1
    %v703 = vadd.f32 %v701, %v702
    %v704 = vadd.f32 %v236, %v252
    %v705 = vadd.f32 %v704, %v268
    %v706 = vadd.f32 %v705, %v284
    %v707 = vadd.f32 %v706, %v300
    %v708 = vadd.f32 %v707, %v316
    %v709 = vadd.f32 %v708, %v332
    %v710 = vadd.f32 %v709, %v348
    %v711 = vrot.slane %v710, 4
    %v712 = vadd.f32 %v710, %v711
    %v713 = vrot.slane %v712, 2
    %v714 = vadd.f32 %v712, %v713
    %v715 = vrot.slane %v714, 1
    %v716 = vadd.f32 %v714, %v715
    %v717 = vadd.f32 %v237, %v253
    %v718 = vadd.f32 %v717, %v269
    %v719 = vadd.f32 %v718, %v285
    %v720 = vadd.f32 %v719, %v301
    %v721 = vadd.f32 %v720, %v317
    %v722 = vadd.f32 %v721, %v333
    %v723 = vadd.f32 %v722, %v349
    %v724 = vrot.slane %v723, 4
    %v725 = vadd.f32 %v723, %v724
    %v726 = vrot.slane %v725, 2
    %v727 = vadd.f32 %v725, %v726
    %v728 = vrot.slane %v727, 1
    %v729 = vadd.f32 %v727, %v728
    %v730 = vadd.f32 %v238, %v254
    %v731 = vadd.f32 %v730, %v270
    %v732 = vadd.f32 %v731, %v286
    %v733 = vadd.f32 %v732, %v302
    %v734 = vadd.f32 %v733, %v318
    %v735 = vadd.f32 %v734, %v334
    %v736 = vadd.f32 %v735, %v350
    %v737 = vrot.slane %v736, 4
    %v738 = vadd.f32 %v736, %v737
    %v739 = vrot.slane %v738, 2
    %v740 = vadd.f32 %v738, %v739
    %v741 = vrot.slane %v740, 1
    %v742 = vadd.f32 %v740, %v741
    %v743 = vadd.f32 %v239, %v255
    %v744 = vadd.f32 %v743, %v271
    %v745 = vadd.f32 %v744, %v287
    %v746 = vadd.f32 %v745, %v303
    %v747 = vadd.f32 %v746, %v319
    %v748 = vadd.f32 %v747, %v335
    %v749 = vadd.f32 %v748, %v351
    %v750 = vrot.slane %v749, 4
    %v751 = vadd.f32 %v749, %v750
    %v752 = vrot.slane %v751, 2
    %v753 = vadd.f32 %v751, %v752
    %v754 = vrot.slane %v753, 1
    %v755 = vadd.f32 %v753, %v754
    %v756 = vadd.f32 %v240, %v256
    %v757 = vadd.f32 %v756, %v272
    %v758 = vadd.f32 %v757, %v288
    %v759 = vadd.f32 %v758, %v304
    %v760 = vadd.f32 %v759, %v320
    %v761 = vadd.f32 %v760, %v336
    %v762 = vadd.f32 %v761, %v352
    %v763 = vrot.slane %v762, 4
    %v764 = vadd.f32 %v762, %v763
    %v765 = vrot.slane %v764, 2
    %v766 = vadd.f32 %v764, %v765
    %v767 = vrot.slane %v766, 1
    %v768 = vadd.f32 %v766, %v767
    %v801 = vcombine.low %v365, %v378
    %v802 = vcombine.low %v391, %v404
    %v804 = vunpack.c.l.s4 1983009808
    %v805 = vunpack.c.0.s8 %v804
    %v806 = vlaneseq
    %v807 = vshrl.u32 %v806, 7
    %v808 = vsub.s32 %v805, %v807
    %v809 = vrot.slane %v801, %v808
    %v811 = vunpack.c.l.s4 1983009808
    %v812 = vunpack.c.0.s8 %v811
    %v813 = vlaneseq
    %v814 = vshrl.u32 %v813, 7
    %v815 = vsub.s32 %v812, %v814
    %v816 = vrot.slane %v802, %v815
    %v817 = vcombine.low %v809, %v816
    %v818 = vcombine.low %v417, %v430
    %v819 = vcombine.low %v443, %v456
    %v821 = vunpack.c.l.s4 1983009808
    %v822 = vunpack.c.0.s8 %v821
    %v823 = vlaneseq
    %v824 = vshrl.u32 %v823, 7
    %v825 = vsub.s32 %v822, %v824
    %v826 = vrot.slane %v818, %v825
    %v828 = vunpack.c.l.s4 1983009808
    %v829 = vunpack.c.0.s8 %v828
    %v830 = vlaneseq
    %v831 = vshrl.u32 %v830, 7
    %v832 = vsub.s32 %v829, %v831
    %v833 = vrot.slane %v819, %v832
    %v834 = vcombine.low %v826, %v833
    %v835 = vcombine.low %v469, %v482
    %v836 = vcombine.low %v495, %v508
    %v838 = vunpack.c.l.s4 1983009808
    %v839 = vunpack.c.0.s8 %v838
    %v840 = vlaneseq
    %v841 = vshrl.u32 %v840, 7
    %v842 = vsub.s32 %v839, %v841
    %v843 = vrot.slane %v835, %v842
    %v845 = vunpack.c.l.s4 1983009808
    %v846 = vunpack.c.0.s8 %v845
    %v847 = vlaneseq
    %v848 = vshrl.u32 %v847, 7
    %v849 = vsub.s32 %v846, %v848
    %v850 = vrot.slane %v836, %v849
    %v851 = vcombine.low %v843, %v850
    %v852 = vcombine.low %v521, %v534
    %v853 = vcombine.low %v547, %v560
    %v855 = vunpack.c.l.s4 1983009808
    %v856 = vunpack.c.0.s8 %v855
    %v857 = vlaneseq
    %v858 = vshrl.u32 %v857, 7
    %v859 = vsub.s32 %v856, %v858
    %v860 = vrot.slane %v852, %v859
    %v862 = vunpack.c.l.s4 1983009808
    %v863 = vunpack.c.0.s8 %v862
    %v864 = vlaneseq
    %v865 = vshrl.u32 %v864, 7
    %v866 = vsub.s32 %v863, %v865
    %v867 = vrot.slane %v853, %v866
    %v868 = vcombine.low %v860, %v867
    %v869 = vcombine.low %v573, %v586
    %v870 = vcombine.low %v599, %v612
    %v872 = vunpack.c.l.s4 1983009808
    %v873 = vunpack.c.0.s8 %v872
    %v874 = vlaneseq
    %v875 = vshrl.u32 %v874, 7
    %v876 = vsub.s32 %v873, %v875
    %v877 = vrot.slane %v869, %v876
    %v879 = vunpack.c.l.s4 1983009808
    %v880 = vunpack.c.0.s8 %v879
    %v881 = vlaneseq
    %v882 = vshrl.u32 %v881, 7
    %v883 = vsub.s32 %v880, %v882
    %v884 = vrot.slane %v870, %v883
    %v885 = vcombine.low %v877, %v884
    %v886 = vcombine.low %v625, %v638
    %v887 = vcombine.low %v651, %v664
    %v889 = vunpack.c.l.s4 1983009808
    %v890 = vunpack.c.0.s8 %v889
    %v891 = vlaneseq
    %v892 = vshrl.u32 %v891, 7
    %v893 = vsub.s32 %v890, %v892
    %v894 = vrot.slane %v886, %v893
    %v896 = vunpack.c.l.s4 1983009808
    %v897 = vunpack.c.0.s8 %v896
    %v898 = vlaneseq
    %v899 = vshrl.u32 %v898, 7
    %v900 = vsub.s32 %v897, %v899
    %v901 = vrot.slane %v887, %v900
    %v902 = vcombine.low %v894, %v901
    %v903 = vcombine.low %v677, %v690
    %v904 = vcombine.low %v703, %v716
    %v906 = vunpack.c.l.s4 1983009808
    %v907 = vunpack.c.0.s8 %v906
    %v908 = vlaneseq
    %v909 = vshrl.u32 %v908, 7
    %v910 = vsub.s32 %v907, %v909
    %v911 = vrot.slane %v903, %v910
    %v913 = vunpack.c.l.s4 1983009808
    %v914 = vunpack.c.0.s8 %v913
    %v915 = vlaneseq
    %v916 = vshrl.u32 %v915, 7
    %v917 = vsub.s32 %v914, %v916
    %v918 = vrot.slane %v904, %v917
    %v919 = vcombine.low %v911, %v918
    %v920 = vcombine.low %v729, %v742
    %v921 = vcombine.low %v755, %v768
    %v923 = vunpack.c.l.s4 1983009808
    %v924 = vunpack.c.0.s8 %v923
    %v925 = vlaneseq
    %v926 = vshrl.u32 %v925, 7
    %v927 = vsub.s32 %v924, %v926
    %v928 = vrot.slane %v920, %v927
    %v930 = vunpack.c.l.s4 1983009808
    %v931 = vunpack.c.0.s8 %v930
    %v932 = vlaneseq
    %v933 = vshrl.u32 %v932, 7
    %v934 = vsub.s32 %v931, %v933
    %v935 = vrot.slane %v921, %v934
    %v936 = vcombine.low %v928, %v935
    %vm937 = vcmask 1044484
    %v938 = vsel %vm937, %v817, %v817
    %vm939 = vcmask 1046534
    %v940 = vsel %vm939, %v817, %v938
    %v941 = vrot.slane %v885, 7
    %vm942 = vcmask 1041409
    %v943 = vsel %vm942, %v941, %v940
    %vm944 = vcmask 1043459
    %v945 = vsel %vm944, %v941, %v943
    %vm946 = vcmask 1045509
    %v947 = vsel %vm946, %v941, %v945
    %vm948 = vcmask 1047559
    %v949 = vsel %vm948, %v941, %v947
    %v950 = vsel %vm937, %v834, %v834
    %v951 = vsel %vm939, %v834, %v950
    %v952 = vrot.slane %v902, 7
    %v953 = vsel %vm942, %v952, %v951
    %v954 = vsel %vm944, %v952, %v953
    %v955 = vsel %vm946, %v952, %v954
    %v956 = vsel %vm948, %v952, %v955
    %v957 = vsel %vm937, %v851, %v851
    %v958 = vsel %vm939, %v851, %v957
    %v959 = vrot.slane %v919, 7
    %v960 = vsel %vm942, %v959, %v958
    %v961 = vsel %vm944, %v959, %v960
    %v962 = vsel %vm946, %v959, %v961
    %v963 = vsel %vm948, %v959, %v962
    %v964 = vsel %vm937, %v868, %v868
    %v965 = vsel %vm939, %v868, %v964
    %v966 = vrot.slane %v936, 7
    %v967 = vsel %vm942, %v966, %v965
    %v968 = vsel %vm944, %v966, %v967
    %v969 = vsel %vm946, %v966, %v968
    %v970 = vsel %vm948, %v966, %v969
    %v975 = vadd.f32 %v93, %v949
    %v976 = vadd.f32 %v94, %v956
    %v977 = vadd.f32 %v95, %v963
    %v978 = vadd.f32 %v96, %v970
    %979 = vst [vmem:[#allocation2] sm:$0xff] %v975
    %980 = vst [vmem:[#allocation2 + $0x8] sm:$0xff] %v976
    %981 = vst [vmem:[#allocation2 + $0x10] sm:$0xff] %v977
    %982 = vst [vmem:[#allocation2 + $0x18] sm:$0xff] %v978
    // Predicated region
    $region46: #{tpu_custom_call.1} parent=1 // pred_check
      %p983 = pneg %p85
    $region47: #{tpu_custom_call.1} parent=1 // pred_check_branch
      %985 = sbr.rel (%p983) target = $region49
    $region48: #{tpu_custom_call.1} parent=1 // pred_region
      %v986 = vld [vmem:[#allocation2] sm:$0xff]
      %v987 = vld [vmem:[#allocation2 + $0x8] sm:$0xff]
      %v988 = vld [vmem:[#allocation2 + $0x10] sm:$0xff]
      %v989 = vld [vmem:[#allocation2 + $0x18] sm:$0xff]
      %v990 = vmul.f32 %v986, 0.015625
      %v991 = vmul.f32 %v987, 0.015625
      %v992 = vmul.f32 %v988, 0.015625
      %v993 = vmul.f32 %v989, 0.015625
      %v994 = vld [vmem:[#allocation6] sm:$0xff]
      %v995 = vld [vmem:[#allocation6 + $0x8] sm:$0xff]
      %v996 = vld [vmem:[#allocation6 + $0x10] sm:$0xff]
      %v997 = vld [vmem:[#allocation6 + $0x18] sm:$0xff]
      %v998 = vld [vmem:[#allocation6 + $0x20] sm:$0xff]
      %v999 = vld [vmem:[#allocation6 + $0x28] sm:$0xff]
      %v1000 = vld [vmem:[#allocation6 + $0x30] sm:$0xff]
      %v1001 = vld [vmem:[#allocation6 + $0x38] sm:$0xff]
      %v1002 = vld [vmem:[#allocation6 + $0x40] sm:$0xff]
      %v1003 = vld [vmem:[#allocation6 + $0x48] sm:$0xff]
      %v1004 = vld [vmem:[#allocation6 + $0x50] sm:$0xff]
      %v1005 = vld [vmem:[#allocation6 + $0x58] sm:$0xff]
      %v1006 = vld [vmem:[#allocation6 + $0x60] sm:$0xff]
      %v1007 = vld [vmem:[#allocation6 + $0x68] sm:$0xff]
      %v1008 = vld [vmem:[#allocation6 + $0x70] sm:$0xff]
      %v1009 = vld [vmem:[#allocation6 + $0x78] sm:$0xff]
      %v1010 = vld [vmem:[#allocation6 + $0x80] sm:$0xff]
      %v1011 = vld [vmem:[#allocation6 + $0x88] sm:$0xff]
      %v1012 = vld [vmem:[#allocation6 + $0x90] sm:$0xff]
      %v1013 = vld [vmem:[#allocation6 + $0x98] sm:$0xff]
      %v1014 = vld [vmem:[#allocation6 + $0xa0] sm:$0xff]
      %v1015 = vld [vmem:[#allocation6 + $0xa8] sm:$0xff]
      %v1016 = vld [vmem:[#allocation6 + $0xb0] sm:$0xff]
      %v1017 = vld [vmem:[#allocation6 + $0xb8] sm:$0xff]
      %v1018 = vld [vmem:[#allocation6 + $0xc0] sm:$0xff]
      %v1019 = vld [vmem:[#allocation6 + $0xc8] sm:$0xff]
      %v1020 = vld [vmem:[#allocation6 + $0xd0] sm:$0xff]
      %v1021 = vld [vmem:[#allocation6 + $0xd8] sm:$0xff]
      %v1022 = vld [vmem:[#allocation6 + $0xe0] sm:$0xff]
      %v1023 = vld [vmem:[#allocation6 + $0xe8] sm:$0xff]
      %v1024 = vld [vmem:[#allocation6 + $0xf0] sm:$0xff]
      %v1025 = vld [vmem:[#allocation6 + $0xf8] sm:$0xff]
      %v1026 = vld [vmem:[#allocation6 + $0x100] sm:$0xff]
      %v1027 = vld [vmem:[#allocation6 + $0x108] sm:$0xff]
      %v1028 = vld [vmem:[#allocation6 + $0x110] sm:$0xff]
      %v1029 = vld [vmem:[#allocation6 + $0x118] sm:$0xff]
      %v1030 = vld [vmem:[#allocation6 + $0x120] sm:$0xff]
      %v1031 = vld [vmem:[#allocation6 + $0x128] sm:$0xff]
      %v1032 = vld [vmem:[#allocation6 + $0x130] sm:$0xff]
      %v1033 = vld [vmem:[#allocation6 + $0x138] sm:$0xff]
      %v1034 = vld [vmem:[#allocation6 + $0x140] sm:$0xff]
      %v1035 = vld [vmem:[#allocation6 + $0x148] sm:$0xff]
      %v1036 = vld [vmem:[#allocation6 + $0x150] sm:$0xff]
      %v1037 = vld [vmem:[#allocation6 + $0x158] sm:$0xff]
      %v1038 = vld [vmem:[#allocation6 + $0x160] sm:$0xff]
      %v1039 = vld [vmem:[#allocation6 + $0x168] sm:$0xff]
      %v1040 = vld [vmem:[#allocation6 + $0x170] sm:$0xff]
      %v1041 = vld [vmem:[#allocation6 + $0x178] sm:$0xff]
      %v1042 = vld [vmem:[#allocation6 + $0x180] sm:$0xff]
      %v1043 = vld [vmem:[#allocation6 + $0x188] sm:$0xff]
      %v1044 = vld [vmem:[#allocation6 + $0x190] sm:$0xff]
      %v1045 = vld [vmem:[#allocation6 + $0x198] sm:$0xff]
      %v1046 = vld [vmem:[#allocation6 + $0x1a0] sm:$0xff]
      %v1047 = vld [vmem:[#allocation6 + $0x1a8] sm:$0xff]
      %v1048 = vld [vmem:[#allocation6 + $0x1b0] sm:$0xff]
      %v1049 = vld [vmem:[#allocation6 + $0x1b8] sm:$0xff]
      %v1050 = vld [vmem:[#allocation6 + $0x1c0] sm:$0xff]
      %v1051 = vld [vmem:[#allocation6 + $0x1c8] sm:$0xff]
      %v1052 = vld [vmem:[#allocation6 + $0x1d0] sm:$0xff]
      %v1053 = vld [vmem:[#allocation6 + $0x1d8] sm:$0xff]
      %v1054 = vld [vmem:[#allocation6 + $0x1e0] sm:$0xff]
      %v1055 = vld [vmem:[#allocation6 + $0x1e8] sm:$0xff]
      %v1056 = vld [vmem:[#allocation6 + $0x1f0] sm:$0xff]
      %v1057 = vld [vmem:[#allocation6 + $0x1f8] sm:$0xff]
      %v1058 = vld [vmem:[#allocation6 + $0x200] sm:$0xff]
      %v1059 = vld [vmem:[#allocation6 + $0x208] sm:$0xff]
      %v1060 = vld [vmem:[#allocation6 + $0x210] sm:$0xff]
      %v1061 = vld [vmem:[#allocation6 + $0x218] sm:$0xff]
      %v1062 = vld [vmem:[#allocation6 + $0x220] sm:$0xff]
      %v1063 = vld [vmem:[#allocation6 + $0x228] sm:$0xff]
      %v1064 = vld [vmem:[#allocation6 + $0x230] sm:$0xff]
      %v1065 = vld [vmem:[#allocation6 + $0x238] sm:$0xff]
      %v1066 = vld [vmem:[#allocation6 + $0x240] sm:$0xff]
      %v1067 = vld [vmem:[#allocation6 + $0x248] sm:$0xff]
      %v1068 = vld [vmem:[#allocation6 + $0x250] sm:$0xff]
      %v1069 = vld [vmem:[#allocation6 + $0x258] sm:$0xff]
      %v1070 = vld [vmem:[#allocation6 + $0x260] sm:$0xff]
      %v1071 = vld [vmem:[#allocation6 + $0x268] sm:$0xff]
      %v1072 = vld [vmem:[#allocation6 + $0x270] sm:$0xff]
      %v1073 = vld [vmem:[#allocation6 + $0x278] sm:$0xff]
      %v1074 = vld [vmem:[#allocation6 + $0x280] sm:$0xff]
      %v1075 = vld [vmem:[#allocation6 + $0x288] sm:$0xff]
      %v1076 = vld [vmem:[#allocation6 + $0x290] sm:$0xff]
      %v1077 = vld [vmem:[#allocation6 + $0x298] sm:$0xff]
      %v1078 = vld [vmem:[#allocation6 + $0x2a0] sm:$0xff]
      %v1079 = vld [vmem:[#allocation6 + $0x2a8] sm:$0xff]
      %v1080 = vld [vmem:[#allocation6 + $0x2b0] sm:$0xff]
      %v1081 = vld [vmem:[#allocation6 + $0x2b8] sm:$0xff]
      %v1082 = vld [vmem:[#allocation6 + $0x2c0] sm:$0xff]
      %v1083 = vld [vmem:[#allocation6 + $0x2c8] sm:$0xff]
      %v1084 = vld [vmem:[#allocation6 + $0x2d0] sm:$0xff]
      %v1085 = vld [vmem:[#allocation6 + $0x2d8] sm:$0xff]
      %v1086 = vld [vmem:[#allocation6 + $0x2e0] sm:$0xff]
      %v1087 = vld [vmem:[#allocation6 + $0x2e8] sm:$0xff]
      %v1088 = vld [vmem:[#allocation6 + $0x2f0] sm:$0xff]
      %v1089 = vld [vmem:[#allocation6 + $0x2f8] sm:$0xff]
      %v1090 = vld [vmem:[#allocation6 + $0x300] sm:$0xff]
      %v1091 = vld [vmem:[#allocation6 + $0x308] sm:$0xff]
      %v1092 = vld [vmem:[#allocation6 + $0x310] sm:$0xff]
      %v1093 = vld [vmem:[#allocation6 + $0x318] sm:$0xff]
      %v1094 = vld [vmem:[#allocation6 + $0x320] sm:$0xff]
      %v1095 = vld [vmem:[#allocation6 + $0x328] sm:$0xff]
      %v1096 = vld [vmem:[#allocation6 + $0x330] sm:$0xff]
      %v1097 = vld [vmem:[#allocation6 + $0x338] sm:$0xff]
      %v1098 = vld [vmem:[#allocation6 + $0x340] sm:$0xff]
      %v1099 = vld [vmem:[#allocation6 + $0x348] sm:$0xff]
      %v1100 = vld [vmem:[#allocation6 + $0x350] sm:$0xff]
      %v1101 = vld [vmem:[#allocation6 + $0x358] sm:$0xff]
      %v1102 = vld [vmem:[#allocation6 + $0x360] sm:$0xff]
      %v1103 = vld [vmem:[#allocation6 + $0x368] sm:$0xff]
      %v1104 = vld [vmem:[#allocation6 + $0x370] sm:$0xff]
      %v1105 = vld [vmem:[#allocation6 + $0x378] sm:$0xff]
      %v1106 = vld [vmem:[#allocation6 + $0x380] sm:$0xff]
      %v1107 = vld [vmem:[#allocation6 + $0x388] sm:$0xff]
      %v1108 = vld [vmem:[#allocation6 + $0x390] sm:$0xff]
      %v1109 = vld [vmem:[#allocation6 + $0x398] sm:$0xff]
      %v1110 = vld [vmem:[#allocation6 + $0x3a0] sm:$0xff]
      %v1111 = vld [vmem:[#allocation6 + $0x3a8] sm:$0xff]
      %v1112 = vld [vmem:[#allocation6 + $0x3b0] sm:$0xff]
      %v1113 = vld [vmem:[#allocation6 + $0x3b8] sm:$0xff]
      %v1114 = vld [vmem:[#allocation6 + $0x3c0] sm:$0xff]
      %v1115 = vld [vmem:[#allocation6 + $0x3c8] sm:$0xff]
      %v1116 = vld [vmem:[#allocation6 + $0x3d0] sm:$0xff]
      %v1117 = vld [vmem:[#allocation6 + $0x3d8] sm:$0xff]
      %v1118 = vld [vmem:[#allocation6 + $0x3e0] sm:$0xff]
      %v1119 = vld [vmem:[#allocation6 + $0x3e8] sm:$0xff]
      %v1120 = vld [vmem:[#allocation6 + $0x3f0] sm:$0xff]
      %v1121 = vld [vmem:[#allocation6 + $0x3f8] sm:$0xff]
      %v1122 = vld [vmem:[#allocation6 + $0x400] sm:$0xff]
      %v1123 = vld [vmem:[#allocation6 + $0x408] sm:$0xff]
      %v1124 = vld [vmem:[#allocation6 + $0x410] sm:$0xff]
      %v1125 = vld [vmem:[#allocation6 + $0x418] sm:$0xff]
      %v1126 = vld [vmem:[#allocation6 + $0x420] sm:$0xff]
      %v1127 = vld [vmem:[#allocation6 + $0x428] sm:$0xff]
      %v1128 = vld [vmem:[#allocation6 + $0x430] sm:$0xff]
      %v1129 = vld [vmem:[#allocation6 + $0x438] sm:$0xff]
      %v1130 = vld [vmem:[#allocation6 + $0x440] sm:$0xff]
      %v1131 = vld [vmem:[#allocation6 + $0x448] sm:$0xff]
      %v1132 = vld [vmem:[#allocation6 + $0x450] sm:$0xff]
      %v1133 = vld [vmem:[#allocation6 + $0x458] sm:$0xff]
      %v1134 = vld [vmem:[#allocation6 + $0x460] sm:$0xff]
      %v1135 = vld [vmem:[#allocation6 + $0x468] sm:$0xff]
      %v1136 = vld [vmem:[#allocation6 + $0x470] sm:$0xff]
      %v1137 = vld [vmem:[#allocation6 + $0x478] sm:$0xff]
      %v1138 = vld [vmem:[#allocation6 + $0x480] sm:$0xff]
      %v1139 = vld [vmem:[#allocation6 + $0x488] sm:$0xff]
      %v1140 = vld [vmem:[#allocation6 + $0x490] sm:$0xff]
      %v1141 = vld [vmem:[#allocation6 + $0x498] sm:$0xff]
      %v1142 = vld [vmem:[#allocation6 + $0x4a0] sm:$0xff]
      %v1143 = vld [vmem:[#allocation6 + $0x4a8] sm:$0xff]
      %v1144 = vld [vmem:[#allocation6 + $0x4b0] sm:$0xff]
      %v1145 = vld [vmem:[#allocation6 + $0x4b8] sm:$0xff]
      %v1146 = vld [vmem:[#allocation6 + $0x4c0] sm:$0xff]
      %v1147 = vld [vmem:[#allocation6 + $0x4c8] sm:$0xff]
      %v1148 = vld [vmem:[#allocation6 + $0x4d0] sm:$0xff]
      %v1149 = vld [vmem:[#allocation6 + $0x4d8] sm:$0xff]
      %v1150 = vld [vmem:[#allocation6 + $0x4e0] sm:$0xff]
      %v1151 = vld [vmem:[#allocation6 + $0x4e8] sm:$0xff]
      %v1152 = vld [vmem:[#allocation6 + $0x4f0] sm:$0xff]
      %v1153 = vld [vmem:[#allocation6 + $0x4f8] sm:$0xff]
      %v1154 = vld [vmem:[#allocation6 + $0x500] sm:$0xff]
      %v1155 = vld [vmem:[#allocation6 + $0x508] sm:$0xff]
      %v1156 = vld [vmem:[#allocation6 + $0x510] sm:$0xff]
      %v1157 = vld [vmem:[#allocation6 + $0x518] sm:$0xff]
      %v1158 = vld [vmem:[#allocation6 + $0x520] sm:$0xff]
      %v1159 = vld [vmem:[#allocation6 + $0x528] sm:$0xff]
      %v1160 = vld [vmem:[#allocation6 + $0x530] sm:$0xff]
      %v1161 = vld [vmem:[#allocation6 + $0x538] sm:$0xff]
      %v1162 = vld [vmem:[#allocation6 + $0x540] sm:$0xff]
      %v1163 = vld [vmem:[#allocation6 + $0x548] sm:$0xff]
      %v1164 = vld [vmem:[#allocation6 + $0x550] sm:$0xff]
      %v1165 = vld [vmem:[#allocation6 + $0x558] sm:$0xff]
      %v1166 = vld [vmem:[#allocation6 + $0x560] sm:$0xff]
      %v1167 = vld [vmem:[#allocation6 + $0x568] sm:$0xff]
      %v1168 = vld [vmem:[#allocation6 + $0x570] sm:$0xff]
      %v1169 = vld [vmem:[#allocation6 + $0x578] sm:$0xff]
      %v1170 = vld [vmem:[#allocation6 + $0x580] sm:$0xff]
      %v1171 = vld [vmem:[#allocation6 + $0x588] sm:$0xff]
      %v1172 = vld [vmem:[#allocation6 + $0x590] sm:$0xff]
      %v1173 = vld [vmem:[#allocation6 + $0x598] sm:$0xff]
      %v1174 = vld [vmem:[#allocation6 + $0x5a0] sm:$0xff]
      %v1175 = vld [vmem:[#allocation6 + $0x5a8] sm:$0xff]
      %v1176 = vld [vmem:[#allocation6 + $0x5b0] sm:$0xff]
      %v1177 = vld [vmem:[#allocation6 + $0x5b8] sm:$0xff]
      %v1178 = vld [vmem:[#allocation6 + $0x5c0] sm:$0xff]
      %v1179 = vld [vmem:[#allocation6 + $0x5c8] sm:$0xff]
      %v1180 = vld [vmem:[#allocation6 + $0x5d0] sm:$0xff]
      %v1181 = vld [vmem:[#allocation6 + $0x5d8] sm:$0xff]
      %v1182 = vld [vmem:[#allocation6 + $0x5e0] sm:$0xff]
      %v1183 = vld [vmem:[#allocation6 + $0x5e8] sm:$0xff]
      %v1184 = vld [vmem:[#allocation6 + $0x5f0] sm:$0xff]
      %v1185 = vld [vmem:[#allocation6 + $0x5f8] sm:$0xff]
      %v1186 = vld [vmem:[#allocation6 + $0x600] sm:$0xff]
      %v1187 = vld [vmem:[#allocation6 + $0x608] sm:$0xff]
      %v1188 = vld [vmem:[#allocation6 + $0x610] sm:$0xff]
      %v1189 = vld [vmem:[#allocation6 + $0x618] sm:$0xff]
      %v1190 = vld [vmem:[#allocation6 + $0x620] sm:$0xff]
      %v1191 = vld [vmem:[#allocation6 + $0x628] sm:$0xff]
      %v1192 = vld [vmem:[#allocation6 + $0x630] sm:$0xff]
      %v1193 = vld [vmem:[#allocation6 + $0x638] sm:$0xff]
      %v1194 = vld [vmem:[#allocation6 + $0x640] sm:$0xff]
      %v1195 = vld [vmem:[#allocation6 + $0x648] sm:$0xff]
      %v1196 = vld [vmem:[#allocation6 + $0x650] sm:$0xff]
      %v1197 = vld [vmem:[#allocation6 + $0x658] sm:$0xff]
      %v1198 = vld [vmem:[#allocation6 + $0x660] sm:$0xff]
      %v1199 = vld [vmem:[#allocation6 + $0x668] sm:$0xff]
      %v1200 = vld [vmem:[#allocation6 + $0x670] sm:$0xff]
      %v1201 = vld [vmem:[#allocation6 + $0x678] sm:$0xff]
      %v1202 = vld [vmem:[#allocation6 + $0x680] sm:$0xff]
      %v1203 = vld [vmem:[#allocation6 + $0x688] sm:$0xff]
      %v1204 = vld [vmem:[#allocation6 + $0x690] sm:$0xff]
      %v1205 = vld [vmem:[#allocation6 + $0x698] sm:$0xff]
      %v1206 = vld [vmem:[#allocation6 + $0x6a0] sm:$0xff]
      %v1207 = vld [vmem:[#allocation6 + $0x6a8] sm:$0xff]
      %v1208 = vld [vmem:[#allocation6 + $0x6b0] sm:$0xff]
      %v1209 = vld [vmem:[#allocation6 + $0x6b8] sm:$0xff]
      %v1210 = vld [vmem:[#allocation6 + $0x6c0] sm:$0xff]
      %v1211 = vld [vmem:[#allocation6 + $0x6c8] sm:$0xff]
      %v1212 = vld [vmem:[#allocation6 + $0x6d0] sm:$0xff]
      %v1213 = vld [vmem:[#allocation6 + $0x6d8] sm:$0xff]
      %v1214 = vld [vmem:[#allocation6 + $0x6e0] sm:$0xff]
      %v1215 = vld [vmem:[#allocation6 + $0x6e8] sm:$0xff]
      %v1216 = vld [vmem:[#allocation6 + $0x6f0] sm:$0xff]
      %v1217 = vld [vmem:[#allocation6 + $0x6f8] sm:$0xff]
      %v1218 = vld [vmem:[#allocation6 + $0x700] sm:$0xff]
      %v1219 = vld [vmem:[#allocation6 + $0x708] sm:$0xff]
      %v1220 = vld [vmem:[#allocation6 + $0x710] sm:$0xff]
      %v1221 = vld [vmem:[#allocation6 + $0x718] sm:$0xff]
      %v1222 = vld [vmem:[#allocation6 + $0x720] sm:$0xff]
      %v1223 = vld [vmem:[#allocation6 + $0x728] sm:$0xff]
      %v1224 = vld [vmem:[#allocation6 + $0x730] sm:$0xff]
      %v1225 = vld [vmem:[#allocation6 + $0x738] sm:$0xff]
      %v1226 = vld [vmem:[#allocation6 + $0x740] sm:$0xff]
      %v1227 = vld [vmem:[#allocation6 + $0x748] sm:$0xff]
      %v1228 = vld [vmem:[#allocation6 + $0x750] sm:$0xff]
      %v1229 = vld [vmem:[#allocation6 + $0x758] sm:$0xff]
      %v1230 = vld [vmem:[#allocation6 + $0x760] sm:$0xff]
      %v1231 = vld [vmem:[#allocation6 + $0x768] sm:$0xff]
      %v1232 = vld [vmem:[#allocation6 + $0x770] sm:$0xff]
      %v1233 = vld [vmem:[#allocation6 + $0x778] sm:$0xff]
      %v1234 = vld [vmem:[#allocation6 + $0x780] sm:$0xff]
      %v1235 = vld [vmem:[#allocation6 + $0x788] sm:$0xff]
      %v1236 = vld [vmem:[#allocation6 + $0x790] sm:$0xff]
      %v1237 = vld [vmem:[#allocation6 + $0x798] sm:$0xff]
      %v1238 = vld [vmem:[#allocation6 + $0x7a0] sm:$0xff]
      %v1239 = vld [vmem:[#allocation6 + $0x7a8] sm:$0xff]
      %v1240 = vld [vmem:[#allocation6 + $0x7b0] sm:$0xff]
      %v1241 = vld [vmem:[#allocation6 + $0x7b8] sm:$0xff]
      %v1242 = vld [vmem:[#allocation6 + $0x7c0] sm:$0xff]
      %v1243 = vld [vmem:[#allocation6 + $0x7c8] sm:$0xff]
      %v1244 = vld [vmem:[#allocation6 + $0x7d0] sm:$0xff]
      %v1245 = vld [vmem:[#allocation6 + $0x7d8] sm:$0xff]
      %v1246 = vld [vmem:[#allocation6 + $0x7e0] sm:$0xff]
      %v1247 = vld [vmem:[#allocation6 + $0x7e8] sm:$0xff]
      %v1248 = vld [vmem:[#allocation6 + $0x7f0] sm:$0xff]
      %v1249 = vld [vmem:[#allocation6 + $0x7f8] sm:$0xff]
      %v1250 = vld [vmem:[#allocation6 + $0x800] sm:$0xff]
      %v1251 = vld [vmem:[#allocation6 + $0x808] sm:$0xff]
      %v1252 = vld [vmem:[#allocation6 + $0x810] sm:$0xff]
      %v1253 = vld [vmem:[#allocation6 + $0x818] sm:$0xff]
      %v1254 = vld [vmem:[#allocation6 + $0x820] sm:$0xff]
      %v1255 = vld [vmem:[#allocation6 + $0x828] sm:$0xff]
      %v1256 = vld [vmem:[#allocation6 + $0x830] sm:$0xff]
      %v1257 = vld [vmem:[#allocation6 + $0x838] sm:$0xff]
      %v1258 = vld [vmem:[#allocation6 + $0x840] sm:$0xff]
      %v1259 = vld [vmem:[#allocation6 + $0x848] sm:$0xff]
      %v1260 = vld [vmem:[#allocation6 + $0x850] sm:$0xff]
      %v1261 = vld [vmem:[#allocation6 + $0x858] sm:$0xff]
      %v1262 = vld [vmem:[#allocation6 + $0x860] sm:$0xff]
      %v1263 = vld [vmem:[#allocation6 + $0x868] sm:$0xff]
      %v1264 = vld [vmem:[#allocation6 + $0x870] sm:$0xff]
      %v1265 = vld [vmem:[#allocation6 + $0x878] sm:$0xff]
      %v1266 = vld [vmem:[#allocation6 + $0x880] sm:$0xff]
      %v1267 = vld [vmem:[#allocation6 + $0x888] sm:$0xff]
      %v1268 = vld [vmem:[#allocation6 + $0x890] sm:$0xff]
      %v1269 = vld [vmem:[#allocation6 + $0x898] sm:$0xff]
      %v1270 = vld [vmem:[#allocation6 + $0x8a0] sm:$0xff]
      %v1271 = vld [vmem:[#allocation6 + $0x8a8] sm:$0xff]
      %v1272 = vld [vmem:[#allocation6 + $0x8b0] sm:$0xff]
      %v1273 = vld [vmem:[#allocation6 + $0x8b8] sm:$0xff]
      %v1274 = vld [vmem:[#allocation6 + $0x8c0] sm:$0xff]
      %v1275 = vld [vmem:[#allocation6 + $0x8c8] sm:$0xff]
      %v1276 = vld [vmem:[#allocation6 + $0x8d0] sm:$0xff]
      %v1277 = vld [vmem:[#allocation6 + $0x8d8] sm:$0xff]
      %v1278 = vld [vmem:[#allocation6 + $0x8e0] sm:$0xff]
      %v1279 = vld [vmem:[#allocation6 + $0x8e8] sm:$0xff]
      %v1280 = vld [vmem:[#allocation6 + $0x8f0] sm:$0xff]
      %v1281 = vld [vmem:[#allocation6 + $0x8f8] sm:$0xff]
      %v1282 = vld [vmem:[#allocation6 + $0x900] sm:$0xff]
      %v1283 = vld [vmem:[#allocation6 + $0x908] sm:$0xff]
      %v1284 = vld [vmem:[#allocation6 + $0x910] sm:$0xff]
      %v1285 = vld [vmem:[#allocation6 + $0x918] sm:$0xff]
      %v1286 = vld [vmem:[#allocation6 + $0x920] sm:$0xff]
      %v1287 = vld [vmem:[#allocation6 + $0x928] sm:$0xff]
      %v1288 = vld [vmem:[#allocation6 + $0x930] sm:$0xff]
      %v1289 = vld [vmem:[#allocation6 + $0x938] sm:$0xff]
      %v1290 = vld [vmem:[#allocation6 + $0x940] sm:$0xff]
      %v1291 = vld [vmem:[#allocation6 + $0x948] sm:$0xff]
      %v1292 = vld [vmem:[#allocation6 + $0x950] sm:$0xff]
      %v1293 = vld [vmem:[#allocation6 + $0x958] sm:$0xff]
      %v1294 = vld [vmem:[#allocation6 + $0x960] sm:$0xff]
      %v1295 = vld [vmem:[#allocation6 + $0x968] sm:$0xff]
      %v1296 = vld [vmem:[#allocation6 + $0x970] sm:$0xff]
      %v1297 = vld [vmem:[#allocation6 + $0x978] sm:$0xff]
      %v1298 = vld [vmem:[#allocation6 + $0x980] sm:$0xff]
      %v1299 = vld [vmem:[#allocation6 + $0x988] sm:$0xff]
      %v1300 = vld [vmem:[#allocation6 + $0x990] sm:$0xff]
      %v1301 = vld [vmem:[#allocation6 + $0x998] sm:$0xff]
      %v1302 = vld [vmem:[#allocation6 + $0x9a0] sm:$0xff]
      %v1303 = vld [vmem:[#allocation6 + $0x9a8] sm:$0xff]
      %v1304 = vld [vmem:[#allocation6 + $0x9b0] sm:$0xff]
      %v1305 = vld [vmem:[#allocation6 + $0x9b8] sm:$0xff]
      %v1306 = vld [vmem:[#allocation6 + $0x9c0] sm:$0xff]
      %v1307 = vld [vmem:[#allocation6 + $0x9c8] sm:$0xff]
      %v1308 = vld [vmem:[#allocation6 + $0x9d0] sm:$0xff]
      %v1309 = vld [vmem:[#allocation6 + $0x9d8] sm:$0xff]
      %v1310 = vld [vmem:[#allocation6 + $0x9e0] sm:$0xff]
      %v1311 = vld [vmem:[#allocation6 + $0x9e8] sm:$0xff]
      %v1312 = vld [vmem:[#allocation6 + $0x9f0] sm:$0xff]
      %v1313 = vld [vmem:[#allocation6 + $0x9f8] sm:$0xff]
      %v1314 = vld [vmem:[#allocation6 + $0xa00] sm:$0xff]
      %v1315 = vld [vmem:[#allocation6 + $0xa08] sm:$0xff]
      %v1316 = vld [vmem:[#allocation6 + $0xa10] sm:$0xff]
      %v1317 = vld [vmem:[#allocation6 + $0xa18] sm:$0xff]
      %v1318 = vld [vmem:[#allocation6 + $0xa20] sm:$0xff]
      %v1319 = vld [vmem:[#allocation6 + $0xa28] sm:$0xff]
      %v1320 = vld [vmem:[#allocation6 + $0xa30] sm:$0xff]
      %v1321 = vld [vmem:[#allocation6 + $0xa38] sm:$0xff]
      %v1322 = vld [vmem:[#allocation6 + $0xa40] sm:$0xff]
      %v1323 = vld [vmem:[#allocation6 + $0xa48] sm:$0xff]
      %v1324 = vld [vmem:[#allocation6 + $0xa50] sm:$0xff]
      %v1325 = vld [vmem:[#allocation6 + $0xa58] sm:$0xff]
      %v1326 = vld [vmem:[#allocation6 + $0xa60] sm:$0xff]
      %v1327 = vld [vmem:[#allocation6 + $0xa68] sm:$0xff]
      %v1328 = vld [vmem:[#allocation6 + $0xa70] sm:$0xff]
      %v1329 = vld [vmem:[#allocation6 + $0xa78] sm:$0xff]
      %v1330 = vld [vmem:[#allocation6 + $0xa80] sm:$0xff]
      %v1331 = vld [vmem:[#allocation6 + $0xa88] sm:$0xff]
      %v1332 = vld [vmem:[#allocation6 + $0xa90] sm:$0xff]
      %v1333 = vld [vmem:[#allocation6 + $0xa98] sm:$0xff]
      %v1334 = vld [vmem:[#allocation6 + $0xaa0] sm:$0xff]
      %v1335 = vld [vmem:[#allocation6 + $0xaa8] sm:$0xff]
      %v1336 = vld [vmem:[#allocation6 + $0xab0] sm:$0xff]
      %v1337 = vld [vmem:[#allocation6 + $0xab8] sm:$0xff]
      %v1338 = vld [vmem:[#allocation6 + $0xac0] sm:$0xff]
      %v1339 = vld [vmem:[#allocation6 + $0xac8] sm:$0xff]
      %v1340 = vld [vmem:[#allocation6 + $0xad0] sm:$0xff]
      %v1341 = vld [vmem:[#allocation6 + $0xad8] sm:$0xff]
      %v1342 = vld [vmem:[#allocation6 + $0xae0] sm:$0xff]
      %v1343 = vld [vmem:[#allocation6 + $0xae8] sm:$0xff]
      %v1344 = vld [vmem:[#allocation6 + $0xaf0] sm:$0xff]
      %v1345 = vld [vmem:[#allocation6 + $0xaf8] sm:$0xff]
      %v1346 = vld [vmem:[#allocation6 + $0xb00] sm:$0xff]
      %v1347 = vld [vmem:[#allocation6 + $0xb08] sm:$0xff]
      %v1348 = vld [vmem:[#allocation6 + $0xb10] sm:$0xff]
      %v1349 = vld [vmem:[#allocation6 + $0xb18] sm:$0xff]
      %v1350 = vld [vmem:[#allocation6 + $0xb20] sm:$0xff]
      %v1351 = vld [vmem:[#allocation6 + $0xb28] sm:$0xff]
      %v1352 = vld [vmem:[#allocation6 + $0xb30] sm:$0xff]
      %v1353 = vld [vmem:[#allocation6 + $0xb38] sm:$0xff]
      %v1354 = vld [vmem:[#allocation6 + $0xb40] sm:$0xff]
      %v1355 = vld [vmem:[#allocation6 + $0xb48] sm:$0xff]
      %v1356 = vld [vmem:[#allocation6 + $0xb50] sm:$0xff]
      %v1357 = vld [vmem:[#allocation6 + $0xb58] sm:$0xff]
      %v1358 = vld [vmem:[#allocation6 + $0xb60] sm:$0xff]
      %v1359 = vld [vmem:[#allocation6 + $0xb68] sm:$0xff]
      %v1360 = vld [vmem:[#allocation6 + $0xb70] sm:$0xff]
      %v1361 = vld [vmem:[#allocation6 + $0xb78] sm:$0xff]
      %v1362 = vld [vmem:[#allocation6 + $0xb80] sm:$0xff]
      %v1363 = vld [vmem:[#allocation6 + $0xb88] sm:$0xff]
      %v1364 = vld [vmem:[#allocation6 + $0xb90] sm:$0xff]
      %v1365 = vld [vmem:[#allocation6 + $0xb98] sm:$0xff]
      %v1366 = vld [vmem:[#allocation6 + $0xba0] sm:$0xff]
      %v1367 = vld [vmem:[#allocation6 + $0xba8] sm:$0xff]
      %v1368 = vld [vmem:[#allocation6 + $0xbb0] sm:$0xff]
      %v1369 = vld [vmem:[#allocation6 + $0xbb8] sm:$0xff]
      %v1370 = vld [vmem:[#allocation6 + $0xbc0] sm:$0xff]
      %v1371 = vld [vmem:[#allocation6 + $0xbc8] sm:$0xff]
      %v1372 = vld [vmem:[#allocation6 + $0xbd0] sm:$0xff]
      %v1373 = vld [vmem:[#allocation6 + $0xbd8] sm:$0xff]
      %v1374 = vld [vmem:[#allocation6 + $0xbe0] sm:$0xff]
      %v1375 = vld [vmem:[#allocation6 + $0xbe8] sm:$0xff]
      %v1376 = vld [vmem:[#allocation6 + $0xbf0] sm:$0xff]
      %v1377 = vld [vmem:[#allocation6 + $0xbf8] sm:$0xff]
      %v1378 = vld [vmem:[#allocation6 + $0xc00] sm:$0xff]
      %v1379 = vld [vmem:[#allocation6 + $0xc08] sm:$0xff]
      %v1380 = vld [vmem:[#allocation6 + $0xc10] sm:$0xff]
      %v1381 = vld [vmem:[#allocation6 + $0xc18] sm:$0xff]
      %v1382 = vld [vmem:[#allocation6 + $0xc20] sm:$0xff]
      %v1383 = vld [vmem:[#allocation6 + $0xc28] sm:$0xff]
      %v1384 = vld [vmem:[#allocation6 + $0xc30] sm:$0xff]
      %v1385 = vld [vmem:[#allocation6 + $0xc38] sm:$0xff]
      %v1386 = vld [vmem:[#allocation6 + $0xc40] sm:$0xff]
      %v1387 = vld [vmem:[#allocation6 + $0xc48] sm:$0xff]
      %v1388 = vld [vmem:[#allocation6 + $0xc50] sm:$0xff]
      %v1389 = vld [vmem:[#allocation6 + $0xc58] sm:$0xff]
      %v1390 = vld [vmem:[#allocation6 + $0xc60] sm:$0xff]
      %v1391 = vld [vmem:[#allocation6 + $0xc68] sm:$0xff]
      %v1392 = vld [vmem:[#allocation6 + $0xc70] sm:$0xff]
      %v1393 = vld [vmem:[#allocation6 + $0xc78] sm:$0xff]
      %v1394 = vld [vmem:[#allocation6 + $0xc80] sm:$0xff]
      %v1395 = vld [vmem:[#allocation6 + $0xc88] sm:$0xff]
      %v1396 = vld [vmem:[#allocation6 + $0xc90] sm:$0xff]
      %v1397 = vld [vmem:[#allocation6 + $0xc98] sm:$0xff]
      %v1398 = vld [vmem:[#allocation6 + $0xca0] sm:$0xff]
      %v1399 = vld [vmem:[#allocation6 + $0xca8] sm:$0xff]
      %v1400 = vld [vmem:[#allocation6 + $0xcb0] sm:$0xff]
      %v1401 = vld [vmem:[#allocation6 + $0xcb8] sm:$0xff]
      %v1402 = vld [vmem:[#allocation6 + $0xcc0] sm:$0xff]
      %v1403 = vld [vmem:[#allocation6 + $0xcc8] sm:$0xff]
      %v1404 = vld [vmem:[#allocation6 + $0xcd0] sm:$0xff]
      %v1405 = vld [vmem:[#allocation6 + $0xcd8] sm:$0xff]
      %v1406 = vld [vmem:[#allocation6 + $0xce0] sm:$0xff]
      %v1407 = vld [vmem:[#allocation6 + $0xce8] sm:$0xff]
      %v1408 = vld [vmem:[#allocation6 + $0xcf0] sm:$0xff]
      %v1409 = vld [vmem:[#allocation6 + $0xcf8] sm:$0xff]
      %v1410 = vld [vmem:[#allocation6 + $0xd00] sm:$0xff]
      %v1411 = vld [vmem:[#allocation6 + $0xd08] sm:$0xff]
      %v1412 = vld [vmem:[#allocation6 + $0xd10] sm:$0xff]
      %v1413 = vld [vmem:[#allocation6 + $0xd18] sm:$0xff]
      %v1414 = vld [vmem:[#allocation6 + $0xd20] sm:$0xff]
      %v1415 = vld [vmem:[#allocation6 + $0xd28] sm:$0xff]
      %v1416 = vld [vmem:[#allocation6 + $0xd30] sm:$0xff]
      %v1417 = vld [vmem:[#allocation6 + $0xd38] sm:$0xff]
      %v1418 = vld [vmem:[#allocation6 + $0xd40] sm:$0xff]
      %v1419 = vld [vmem:[#allocation6 + $0xd48] sm:$0xff]
      %v1420 = vld [vmem:[#allocation6 + $0xd50] sm:$0xff]
      %v1421 = vld [vmem:[#allocation6 + $0xd58] sm:$0xff]
      %v1422 = vld [vmem:[#allocation6 + $0xd60] sm:$0xff]
      %v1423 = vld [vmem:[#allocation6 + $0xd68] sm:$0xff]
      %v1424 = vld [vmem:[#allocation6 + $0xd70] sm:$0xff]
      %v1425 = vld [vmem:[#allocation6 + $0xd78] sm:$0xff]
      %v1426 = vld [vmem:[#allocation6 + $0xd80] sm:$0xff]
      %v1427 = vld [vmem:[#allocation6 + $0xd88] sm:$0xff]
      %v1428 = vld [vmem:[#allocation6 + $0xd90] sm:$0xff]
      %v1429 = vld [vmem:[#allocation6 + $0xd98] sm:$0xff]
      %v1430 = vld [vmem:[#allocation6 + $0xda0] sm:$0xff]
      %v1431 = vld [vmem:[#allocation6 + $0xda8] sm:$0xff]
      %v1432 = vld [vmem:[#allocation6 + $0xdb0] sm:$0xff]
      %v1433 = vld [vmem:[#allocation6 + $0xdb8] sm:$0xff]
      %v1434 = vld [vmem:[#allocation6 + $0xdc0] sm:$0xff]
      %v1435 = vld [vmem:[#allocation6 + $0xdc8] sm:$0xff]
      %v1436 = vld [vmem:[#allocation6 + $0xdd0] sm:$0xff]
      %v1437 = vld [vmem:[#allocation6 + $0xdd8] sm:$0xff]
      %v1438 = vld [vmem:[#allocation6 + $0xde0] sm:$0xff]
      %v1439 = vld [vmem:[#allocation6 + $0xde8] sm:$0xff]
      %v1440 = vld [vmem:[#allocation6 + $0xdf0] sm:$0xff]
      %v1441 = vld [vmem:[#allocation6 + $0xdf8] sm:$0xff]
      %v1442 = vld [vmem:[#allocation6 + $0xe00] sm:$0xff]
      %v1443 = vld [vmem:[#allocation6 + $0xe08] sm:$0xff]
      %v1444 = vld [vmem:[#allocation6 + $0xe10] sm:$0xff]
      %v1445 = vld [vmem:[#allocation6 + $0xe18] sm:$0xff]
      %v1446 = vld [vmem:[#allocation6 + $0xe20] sm:$0xff]
      %v1447 = vld [vmem:[#allocation6 + $0xe28] sm:$0xff]
      %v1448 = vld [vmem:[#allocation6 + $0xe30] sm:$0xff]
      %v1449 = vld [vmem:[#allocation6 + $0xe38] sm:$0xff]
      %v1450 = vld [vmem:[#allocation6 + $0xe40] sm:$0xff]
      %v1451 = vld [vmem:[#allocation6 + $0xe48] sm:$0xff]
      %v1452 = vld [vmem:[#allocation6 + $0xe50] sm:$0xff]
      %v1453 = vld [vmem:[#allocation6 + $0xe58] sm:$0xff]
      %v1454 = vld [vmem:[#allocation6 + $0xe60] sm:$0xff]
      %v1455 = vld [vmem:[#allocation6 + $0xe68] sm:$0xff]
      %v1456 = vld [vmem:[#allocation6 + $0xe70] sm:$0xff]
      %v1457 = vld [vmem:[#allocation6 + $0xe78] sm:$0xff]
      %v1458 = vld [vmem:[#allocation6 + $0xe80] sm:$0xff]
      %v1459 = vld [vmem:[#allocation6 + $0xe88] sm:$0xff]
      %v1460 = vld [vmem:[#allocation6 + $0xe90] sm:$0xff]
      %v1461 = vld [vmem:[#allocation6 + $0xe98] sm:$0xff]
      %v1462 = vld [vmem:[#allocation6 + $0xea0] sm:$0xff]
      %v1463 = vld [vmem:[#allocation6 + $0xea8] sm:$0xff]
      %v1464 = vld [vmem:[#allocation6 + $0xeb0] sm:$0xff]
      %v1465 = vld [vmem:[#allocation6 + $0xeb8] sm:$0xff]
      %v1466 = vld [vmem:[#allocation6 + $0xec0] sm:$0xff]
      %v1467 = vld [vmem:[#allocation6 + $0xec8] sm:$0xff]
      %v1468 = vld [vmem:[#allocation6 + $0xed0] sm:$0xff]
      %v1469 = vld [vmem:[#allocation6 + $0xed8] sm:$0xff]
      %v1470 = vld [vmem:[#allocation6 + $0xee0] sm:$0xff]
      %v1471 = vld [vmem:[#allocation6 + $0xee8] sm:$0xff]
      %v1472 = vld [vmem:[#allocation6 + $0xef0] sm:$0xff]
      %v1473 = vld [vmem:[#allocation6 + $0xef8] sm:$0xff]
      %v1474 = vld [vmem:[#allocation6 + $0xf00] sm:$0xff]
      %v1475 = vld [vmem:[#allocation6 + $0xf08] sm:$0xff]
      %v1476 = vld [vmem:[#allocation6 + $0xf10] sm:$0xff]
      %v1477 = vld [vmem:[#allocation6 + $0xf18] sm:$0xff]
      %v1478 = vld [vmem:[#allocation6 + $0xf20] sm:$0xff]
      %v1479 = vld [vmem:[#allocation6 + $0xf28] sm:$0xff]
      %v1480 = vld [vmem:[#allocation6 + $0xf30] sm:$0xff]
      %v1481 = vld [vmem:[#allocation6 + $0xf38] sm:$0xff]
      %v1482 = vld [vmem:[#allocation6 + $0xf40] sm:$0xff]
      %v1483 = vld [vmem:[#allocation6 + $0xf48] sm:$0xff]
      %v1484 = vld [vmem:[#allocation6 + $0xf50] sm:$0xff]
      %v1485 = vld [vmem:[#allocation6 + $0xf58] sm:$0xff]
      %v1486 = vld [vmem:[#allocation6 + $0xf60] sm:$0xff]
      %v1487 = vld [vmem:[#allocation6 + $0xf68] sm:$0xff]
      %v1488 = vld [vmem:[#allocation6 + $0xf70] sm:$0xff]
      %v1489 = vld [vmem:[#allocation6 + $0xf78] sm:$0xff]
      %v1490 = vld [vmem:[#allocation6 + $0xf80] sm:$0xff]
      %v1491 = vld [vmem:[#allocation6 + $0xf88] sm:$0xff]
      %v1492 = vld [vmem:[#allocation6 + $0xf90] sm:$0xff]
      %v1493 = vld [vmem:[#allocation6 + $0xf98] sm:$0xff]
      %v1494 = vld [vmem:[#allocation6 + $0xfa0] sm:$0xff]
      %v1495 = vld [vmem:[#allocation6 + $0xfa8] sm:$0xff]
      %v1496 = vld [vmem:[#allocation6 + $0xfb0] sm:$0xff]
      %v1497 = vld [vmem:[#allocation6 + $0xfb8] sm:$0xff]
      %v1498 = vld [vmem:[#allocation6 + $0xfc0] sm:$0xff]
      %v1499 = vld [vmem:[#allocation6 + $0xfc8] sm:$0xff]
      %v1500 = vld [vmem:[#allocation6 + $0xfd0] sm:$0xff]
      %v1501 = vld [vmem:[#allocation6 + $0xfd8] sm:$0xff]
      %v1502 = vld [vmem:[#allocation6 + $0xfe0] sm:$0xff]
      %v1503 = vld [vmem:[#allocation6 + $0xfe8] sm:$0xff]
      %v1504 = vld [vmem:[#allocation6 + $0xff0] sm:$0xff]
      %v1505 = vld [vmem:[#allocation6 + $0xff8] sm:$0xff]
      %v1506 = vld [vmem:[#allocation8] sm:$0x3]
      %v1508 = vlaneseq
      %v1509 = vshrl.u32 %v1508, 7
      %v1510 = vsub.s32 0, %v1509
      %v1511 = vrot.slane %v1506, %v1510
      %v1512 = vlaneseq
      %v1513 = vshrl.u32 %v1512, 7
      %v1514 = vsub.s32 1, %v1513
      %v1515 = vrot.slane %v1506, %v1514
      %v1522 = vcombine.high %v990, %v990
      %v1524 = vunpack.c.l.s4 1983009808
      %v1525 = vunpack.c.0.s8 %v1524
      %v1526 = vlaneseq
      %v1527 = vshrl.u32 %v1526, 7
      %v1528 = vsub.s32 %v1525, %v1527
      %v1529 = vrot.slane %v990, %v1528
      %v1531 = vunpack.c.l.s4 1983009808
      %v1532 = vunpack.c.0.s8 %v1531
      %v1533 = vlaneseq
      %v1534 = vshrl.u32 %v1533, 7
      %v1535 = vsub.s32 %v1532, %v1534
      %v1536 = vrot.slane %v1522, %v1535
      %v1537 = vcombine.high %v1529, %v1529
      %v1538 = vcombine.high %v1536, %v1536
      %v1539 = vcombine.high %v991, %v991
      %v1541 = vunpack.c.l.s4 1983009808
      %v1542 = vunpack.c.0.s8 %v1541
      %v1543 = vlaneseq
      %v1544 = vshrl.u32 %v1543, 7
      %v1545 = vsub.s32 %v1542, %v1544
      %v1546 = vrot.slane %v991, %v1545
      %v1548 = vunpack.c.l.s4 1983009808
      %v1549 = vunpack.c.0.s8 %v1548
      %v1550 = vlaneseq
      %v1551 = vshrl.u32 %v1550, 7
      %v1552 = vsub.s32 %v1549, %v1551
      %v1553 = vrot.slane %v1539, %v1552
      %v1554 = vcombine.high %v1546, %v1546
      %v1555 = vcombine.high %v1553, %v1553
      %v1556 = vcombine.high %v992, %v992
      %v1558 = vunpack.c.l.s4 1983009808
      %v1559 = vunpack.c.0.s8 %v1558
      %v1560 = vlaneseq
      %v1561 = vshrl.u32 %v1560, 7
      %v1562 = vsub.s32 %v1559, %v1561
      %v1563 = vrot.slane %v992, %v1562
      %v1565 = vunpack.c.l.s4 1983009808
      %v1566 = vunpack.c.0.s8 %v1565
      %v1567 = vlaneseq
      %v1568 = vshrl.u32 %v1567, 7
      %v1569 = vsub.s32 %v1566, %v1568
      %v1570 = vrot.slane %v1556, %v1569
      %v1571 = vcombine.high %v1563, %v1563
      %v1572 = vcombine.high %v1570, %v1570
      %v1573 = vcombine.high %v993, %v993
      %v1575 = vunpack.c.l.s4 1983009808
      %v1576 = vunpack.c.0.s8 %v1575
      %v1577 = vlaneseq
      %v1578 = vshrl.u32 %v1577, 7
      %v1579 = vsub.s32 %v1576, %v1578
      %v1580 = vrot.slane %v993, %v1579
      %v1582 = vunpack.c.l.s4 1983009808
      %v1583 = vunpack.c.0.s8 %v1582
      %v1584 = vlaneseq
      %v1585 = vshrl.u32 %v1584, 7
      %v1586 = vsub.s32 %v1583, %v1585
      %v1587 = vrot.slane %v1573, %v1586
      %v1588 = vcombine.high %v1580, %v1580
      %v1589 = vcombine.high %v1587, %v1587
      %1606 = vmatprep.subr.mxu0 %v995
      %1607 = vmatpush1.msra.mxu0 %v994
      %1608 = vmatprep.subr.mxu0 %v997
      %1609 = vmatpush1.msra.mxu0 %v996
      %1610 = vmatprep.subr.mxu0 %v999
      %1611 = vmatpush1.msra.mxu0 %v998
      %1612 = vmatprep.subr.mxu0 %v1001
      %1613 = vmatpush1.msra.mxu0 %v1000
      %1614 = vmatprep.subr.mxu0 %v1003
      %1615 = vmatpush1.msra.mxu0 %v1002
      %1616 = vmatprep.subr.mxu0 %v1005
      %1617 = vmatpush1.msra.mxu0 %v1004
      %1618 = vmatprep.subr.mxu0 %v1007
      %1619 = vmatpush1.msra.mxu0 %v1006
      %1620 = vmatprep.subr.mxu0 %v1009
      %1621 = vmatpush1.msra.mxu0 %v1008
      %1622 = vmatprep.subr.mxu0 %v1011
      %1623 = vmatpush1.msra.mxu0 %v1010
      %1624 = vmatprep.subr.mxu0 %v1013
      %1625 = vmatpush1.msra.mxu0 %v1012
      %1626 = vmatprep.subr.mxu0 %v1015
      %1627 = vmatpush1.msra.mxu0 %v1014
      %1628 = vmatprep.subr.mxu0 %v1017
      %1629 = vmatpush1.msra.mxu0 %v1016
      %1630 = vmatprep.subr.mxu0 %v1019
      %1631 = vmatpush1.msra.mxu0 %v1018
      %1632 = vmatprep.subr.mxu0 %v1021
      %1633 = vmatpush1.msra.mxu0 %v1020
      %1634 = vmatprep.subr.mxu0 %v1023
      %1635 = vmatpush1.msra.mxu0 %v1022
      %1636 = vmatprep.subr.mxu0 %v1025
      %1637 = vmatpush1.msra.mxu0 %v1024
      %1638 = vmatprep.subr.mxu0 %v1027
      %1639 = vmatpush1.msra.mxu0 %v1026
      %1640 = vmatprep.subr.mxu0 %v1029
      %1641 = vmatpush1.msra.mxu0 %v1028
      %1642 = vmatprep.subr.mxu0 %v1031
      %1643 = vmatpush1.msra.mxu0 %v1030
      %1644 = vmatprep.subr.mxu0 %v1033
      %1645 = vmatpush1.msra.mxu0 %v1032
      %1646 = vmatprep.subr.mxu0 %v1035
      %1647 = vmatpush1.msra.mxu0 %v1034
      %1648 = vmatprep.subr.mxu0 %v1037
      %1649 = vmatpush1.msra.mxu0 %v1036
      %1650 = vmatprep.subr.mxu0 %v1039
      %1651 = vmatpush1.msra.mxu0 %v1038
      %1652 = vmatprep.subr.mxu0 %v1041
      %1653 = vmatpush1.msra.mxu0 %v1040
      %1654 = vmatprep.subr.mxu0 %v1043
      %1655 = vmatpush1.msra.mxu0 %v1042
      %1656 = vmatprep.subr.mxu0 %v1045
      %1657 = vmatpush1.msra.mxu0 %v1044
      %1658 = vmatprep.subr.mxu0 %v1047
      %1659 = vmatpush1.msra.mxu0 %v1046
      %1660 = vmatprep.subr.mxu0 %v1049
      %1661 = vmatpush1.msra.mxu0 %v1048
      %1662 = vmatprep.subr.mxu0 %v1051
      %1663 = vmatpush1.msra.mxu0 %v1050
      %1664 = vmatprep.subr.mxu0 %v1053
      %1665 = vmatpush1.msra.mxu0 %v1052
      %1666 = vmatprep.subr.mxu0 %v1055
      %1667 = vmatpush1.msra.mxu0 %v1054
      %1668 = vmatprep.subr.mxu0 %v1057
      %1669 = vmatpush1.msra.mxu0 %v1056
      %1670 = vmatprep.mubr.f32.mxu0 %v1537
      %1671 = vmatmul.mubr.f32.gmra.mrb[0].mxu0 %v1529
      %v1672 = vpop.f32.mrb[0].mxu0
      %v1673 = vadd.f32 %v1511, %v1672
      %v1674 = vpop.f32.mrb[0].mxu0
      %v1675 = vadd.f32 %v1515, %v1674
      %1676 = vdwg.mxu0
      %1677 = vmatprep.subr.mxu0 %v1059
      %1678 = vmatpush1.msra.mxu0 %v1058
      %1679 = vmatprep.subr.mxu0 %v1061
      %1680 = vmatpush1.msra.mxu0 %v1060
      %1681 = vmatprep.subr.mxu0 %v1063
      %1682 = vmatpush1.msra.mxu0 %v1062
      %1683 = vmatprep.subr.mxu0 %v1065
      %1684 = vmatpush1.msra.mxu0 %v1064
      %1685 = vmatprep.subr.mxu0 %v1067
      %1686 = vmatpush1.msra.mxu0 %v1066
      %1687 = vmatprep.subr.mxu0 %v1069
      %1688 = vmatpush1.msra.mxu0 %v1068
      %1689 = vmatprep.subr.mxu0 %v1071
      %1690 = vmatpush1.msra.mxu0 %v1070
      %1691 = vmatprep.subr.mxu0 %v1073
      %1692 = vmatpush1.msra.mxu0 %v1072
      %1693 = vmatprep.subr.mxu0 %v1075
      %1694 = vmatpush1.msra.mxu0 %v1074
      %1695 = vmatprep.subr.mxu0 %v1077
      %1696 = vmatpush1.msra.mxu0 %v1076
      %1697 = vmatprep.subr.mxu0 %v1079
      %1698 = vmatpush1.msra.mxu0 %v1078
      %1699 = vmatprep.subr.mxu0 %v1081
      %1700 = vmatpush1.msra.mxu0 %v1080
      %1701 = vmatprep.subr.mxu0 %v1083
      %1702 = vmatpush1.msra.mxu0 %v1082
      %1703 = vmatprep.subr.mxu0 %v1085
      %1704 = vmatpush1.msra.mxu0 %v1084
      %1705 = vmatprep.subr.mxu0 %v1087
      %1706 = vmatpush1.msra.mxu0 %v1086
      %1707 = vmatprep.subr.mxu0 %v1089
      %1708 = vmatpush1.msra.mxu0 %v1088
      %1709 = vmatprep.subr.mxu0 %v1091
      %1710 = vmatpush1.msra.mxu0 %v1090
      %1711 = vmatprep.subr.mxu0 %v1093
      %1712 = vmatpush1.msra.mxu0 %v1092
      %1713 = vmatprep.subr.mxu0 %v1095
      %1714 = vmatpush1.msra.mxu0 %v1094
      %1715 = vmatprep.subr.mxu0 %v1097
      %1716 = vmatpush1.msra.mxu0 %v1096
      %1717 = vmatprep.subr.mxu0 %v1099
      %1718 = vmatpush1.msra.mxu0 %v1098
      %1719 = vmatprep.subr.mxu0 %v1101
      %1720 = vmatpush1.msra.mxu0 %v1100
      %1721 = vmatprep.subr.mxu0 %v1103
      %1722 = vmatpush1.msra.mxu0 %v1102
      %1723 = vmatprep.subr.mxu0 %v1105
      %1724 = vmatpush1.msra.mxu0 %v1104
      %1725 = vmatprep.subr.mxu0 %v1107
      %1726 = vmatpush1.msra.mxu0 %v1106
      %1727 = vmatprep.subr.mxu0 %v1109
      %1728 = vmatpush1.msra.mxu0 %v1108
      %1729 = vmatprep.subr.mxu0 %v1111
      %1730 = vmatpush1.msra.mxu0 %v1110
      %1731 = vmatprep.subr.mxu0 %v1113
      %1732 = vmatpush1.msra.mxu0 %v1112
      %1733 = vmatprep.subr.mxu0 %v1115
      %1734 = vmatpush1.msra.mxu0 %v1114
      %1735 = vmatprep.subr.mxu0 %v1117
      %1736 = vmatpush1.msra.mxu0 %v1116
      %1737 = vmatprep.subr.mxu0 %v1119
      %1738 = vmatpush1.msra.mxu0 %v1118
      %1739 = vmatprep.subr.mxu0 %v1121
      %1740 = vmatpush1.msra.mxu0 %v1120
      %1741 = vmatprep.mubr.f32.mxu0 %v1538
      %1742 = vmatmul.mubr.f32.gmra.mrb[0].mxu0 %v1536
      %v1743 = vpop.f32.mrb[0].mxu0
      %v1744 = vadd.f32 %v1673, %v1743
      %v1745 = vpop.f32.mrb[0].mxu0
      %v1746 = vadd.f32 %v1675, %v1745
      %1747 = vdwg.mxu0
      %1748 = vmatprep.subr.mxu0 %v1123
      %1749 = vmatpush1.msra.mxu0 %v1122
      %1750 = vmatprep.subr.mxu0 %v1125
      %1751 = vmatpush1.msra.mxu0 %v1124
      %1752 = vmatprep.subr.mxu0 %v1127
      %1753 = vmatpush1.msra.mxu0 %v1126
      %1754 = vmatprep.subr.mxu0 %v1129
      %1755 = vmatpush1.msra.mxu0 %v1128
      %1756 = vmatprep.subr.mxu0 %v1131
      %1757 = vmatpush1.msra.mxu0 %v1130
      %1758 = vmatprep.subr.mxu0 %v1133
      %1759 = vmatpush1.msra.mxu0 %v1132
      %1760 = vmatprep.subr.mxu0 %v1135
      %1761 = vmatpush1.msra.mxu0 %v1134
      %1762 = vmatprep.subr.mxu0 %v1137
      %1763 = vmatpush1.msra.mxu0 %v1136
      %1764 = vmatprep.subr.mxu0 %v1139
      %1765 = vmatpush1.msra.mxu0 %v1138
      %1766 = vmatprep.subr.mxu0 %v1141
      %1767 = vmatpush1.msra.mxu0 %v1140
      %1768 = vmatprep.subr.mxu0 %v1143
      %1769 = vmatpush1.msra.mxu0 %v1142
      %1770 = vmatprep.subr.mxu0 %v1145
      %1771 = vmatpush1.msra.mxu0 %v1144
      %1772 = vmatprep.subr.mxu0 %v1147
      %1773 = vmatpush1.msra.mxu0 %v1146
      %1774 = vmatprep.subr.mxu0 %v1149
      %1775 = vmatpush1.msra.mxu0 %v1148
      %1776 = vmatprep.subr.mxu0 %v1151
      %1777 = vmatpush1.msra.mxu0 %v1150
      %1778 = vmatprep.subr.mxu0 %v1153
      %1779 = vmatpush1.msra.mxu0 %v1152
      %1780 = vmatprep.subr.mxu0 %v1155
      %1781 = vmatpush1.msra.mxu0 %v1154
      %1782 = vmatprep.subr.mxu0 %v1157
      %1783 = vmatpush1.msra.mxu0 %v1156
      %1784 = vmatprep.subr.mxu0 %v1159
      %1785 = vmatpush1.msra.mxu0 %v1158
      %1786 = vmatprep.subr.mxu0 %v1161
      %1787 = vmatpush1.msra.mxu0 %v1160
      %1788 = vmatprep.subr.mxu0 %v1163
      %1789 = vmatpush1.msra.mxu0 %v1162
      %1790 = vmatprep.subr.mxu0 %v1165
      %1791 = vmatpush1.msra.mxu0 %v1164
      %1792 = vmatprep.subr.mxu0 %v1167
      %1793 = vmatpush1.msra.mxu0 %v1166
      %1794 = vmatprep.subr.mxu0 %v1169
      %1795 = vmatpush1.msra.mxu0 %v1168
      %1796 = vmatprep.subr.mxu0 %v1171
      %1797 = vmatpush1.msra.mxu0 %v1170
      %1798 = vmatprep.subr.mxu0 %v1173
      %1799 = vmatpush1.msra.mxu0 %v1172
      %1800 = vmatprep.subr.mxu0 %v1175
      %1801 = vmatpush1.msra.mxu0 %v1174
      %1802 = vmatprep.subr.mxu0 %v1177
      %1803 = vmatpush1.msra.mxu0 %v1176
      %1804 = vmatprep.subr.mxu0 %v1179
      %1805 = vmatpush1.msra.mxu0 %v1178
      %1806 = vmatprep.subr.mxu0 %v1181
      %1807 = vmatpush1.msra.mxu0 %v1180
      %1808 = vmatprep.subr.mxu0 %v1183
      %1809 = vmatpush1.msra.mxu0 %v1182
      %1810 = vmatprep.subr.mxu0 %v1185
      %1811 = vmatpush1.msra.mxu0 %v1184
      %1812 = vmatprep.mubr.f32.mxu0 %v1554
      %1813 = vmatmul.mubr.f32.gmra.mrb[0].mxu0 %v1546
      %v1814 = vpop.f32.mrb[0].mxu0
      %v1815 = vadd.f32 %v1744, %v1814
      %v1816 = vpop.f32.mrb[0].mxu0
      %v1817 = vadd.f32 %v1746, %v1816
      %1818 = vdwg.mxu0
      %1819 = vmatprep.subr.mxu0 %v1187
      %1820 = vmatpush1.msra.mxu0 %v1186
      %1821 = vmatprep.subr.mxu0 %v1189
      %1822 = vmatpush1.msra.mxu0 %v1188
      %1823 = vmatprep.subr.mxu0 %v1191
      %1824 = vmatpush1.msra.mxu0 %v1190
      %1825 = vmatprep.subr.mxu0 %v1193
      %1826 = vmatpush1.msra.mxu0 %v1192
      %1827 = vmatprep.subr.mxu0 %v1195
      %1828 = vmatpush1.msra.mxu0 %v1194
      %1829 = vmatprep.subr.mxu0 %v1197
      %1830 = vmatpush1.msra.mxu0 %v1196
      %1831 = vmatprep.subr.mxu0 %v1199
      %1832 = vmatpush1.msra.mxu0 %v1198
      %1833 = vmatprep.subr.mxu0 %v1201
      %1834 = vmatpush1.msra.mxu0 %v1200
      %1835 = vmatprep.subr.mxu0 %v1203
      %1836 = vmatpush1.msra.mxu0 %v1202
      %1837 = vmatprep.subr.mxu0 %v1205
      %1838 = vmatpush1.msra.mxu0 %v1204
      %1839 = vmatprep.subr.mxu0 %v1207
      %1840 = vmatpush1.msra.mxu0 %v1206
      %1841 = vmatprep.subr.mxu0 %v1209
      %1842 = vmatpush1.msra.mxu0 %v1208
      %1843 = vmatprep.subr.mxu0 %v1211
      %1844 = vmatpush1.msra.mxu0 %v1210
      %1845 = vmatprep.subr.mxu0 %v1213
      %1846 = vmatpush1.msra.mxu0 %v1212
      %1847 = vmatprep.subr.mxu0 %v1215
      %1848 = vmatpush1.msra.mxu0 %v1214
      %1849 = vmatprep.subr.mxu0 %v1217
      %1850 = vmatpush1.msra.mxu0 %v1216
      %1851 = vmatprep.subr.mxu0 %v1219
      %1852 = vmatpush1.msra.mxu0 %v1218
      %1853 = vmatprep.subr.mxu0 %v1221
      %1854 = vmatpush1.msra.mxu0 %v1220
      %1855 = vmatprep.subr.mxu0 %v1223
      %1856 = vmatpush1.msra.mxu0 %v1222
      %1857 = vmatprep.subr.mxu0 %v1225
      %1858 = vmatpush1.msra.mxu0 %v1224
      %1859 = vmatprep.subr.mxu0 %v1227
      %1860 = vmatpush1.msra.mxu0 %v1226
      %1861 = vmatprep.subr.mxu0 %v1229
      %1862 = vmatpush1.msra.mxu0 %v1228
      %1863 = vmatprep.subr.mxu0 %v1231
      %1864 = vmatpush1.msra.mxu0 %v1230
      %1865 = vmatprep.subr.mxu0 %v1233
      %1866 = vmatpush1.msra.mxu0 %v1232
      %1867 = vmatprep.subr.mxu0 %v1235
      %1868 = vmatpush1.msra.mxu0 %v1234
      %1869 = vmatprep.subr.mxu0 %v1237
      %1870 = vmatpush1.msra.mxu0 %v1236
      %1871 = vmatprep.subr.mxu0 %v1239
      %1872 = vmatpush1.msra.mxu0 %v1238
      %1873 = vmatprep.subr.mxu0 %v1241
      %1874 = vmatpush1.msra.mxu0 %v1240
      %1875 = vmatprep.subr.mxu0 %v1243
      %1876 = vmatpush1.msra.mxu0 %v1242
      %1877 = vmatprep.subr.mxu0 %v1245
      %1878 = vmatpush1.msra.mxu0 %v1244
      %1879 = vmatprep.subr.mxu0 %v1247
      %1880 = vmatpush1.msra.mxu0 %v1246
      %1881 = vmatprep.subr.mxu0 %v1249
      %1882 = vmatpush1.msra.mxu0 %v1248
      %1883 = vmatprep.mubr.f32.mxu0 %v1555
      %1884 = vmatmul.mubr.f32.gmra.mrb[0].mxu0 %v1553
      %v1885 = vpop.f32.mrb[0].mxu0
      %v1886 = vadd.f32 %v1815, %v1885
      %v1887 = vpop.f32.mrb[0].mxu0
      %v1888 = vadd.f32 %v1817, %v1887
      %1889 = vdwg.mxu0
      %1890 = vmatprep.subr.mxu0 %v1251
      %1891 = vmatpush1.msra.mxu0 %v1250
      %1892 = vmatprep.subr.mxu0 %v1253
      %1893 = vmatpush1.msra.mxu0 %v1252
      %1894 = vmatprep.subr.mxu0 %v1255
      %1895 = vmatpush1.msra.mxu0 %v1254
      %1896 = vmatprep.subr.mxu0 %v1257
      %1897 = vmatpush1.msra.mxu0 %v1256
      %1898 = vmatprep.subr.mxu0 %v1259
      %1899 = vmatpush1.msra.mxu0 %v1258
      %1900 = vmatprep.subr.mxu0 %v1261
      %1901 = vmatpush1.msra.mxu0 %v1260
      %1902 = vmatprep.subr.mxu0 %v1263
      %1903 = vmatpush1.msra.mxu0 %v1262
      %1904 = vmatprep.subr.mxu0 %v1265
      %1905 = vmatpush1.msra.mxu0 %v1264
      %1906 = vmatprep.subr.mxu0 %v1267
      %1907 = vmatpush1.msra.mxu0 %v1266
      %1908 = vmatprep.subr.mxu0 %v1269
      %1909 = vmatpush1.msra.mxu0 %v1268
      %1910 = vmatprep.subr.mxu0 %v1271
      %1911 = vmatpush1.msra.mxu0 %v1270
      %1912 = vmatprep.subr.mxu0 %v1273
      %1913 = vmatpush1.msra.mxu0 %v1272
      %1914 = vmatprep.subr.mxu0 %v1275
      %1915 = vmatpush1.msra.mxu0 %v1274
      %1916 = vmatprep.subr.mxu0 %v1277
      %1917 = vmatpush1.msra.mxu0 %v1276
      %1918 = vmatprep.subr.mxu0 %v1279
      %1919 = vmatpush1.msra.mxu0 %v1278
      %1920 = vmatprep.subr.mxu0 %v1281
      %1921 = vmatpush1.msra.mxu0 %v1280
      %1922 = vmatprep.subr.mxu0 %v1283
      %1923 = vmatpush1.msra.mxu0 %v1282
      %1924 = vmatprep.subr.mxu0 %v1285
      %1925 = vmatpush1.msra.mxu0 %v1284
      %1926 = vmatprep.subr.mxu0 %v1287
      %1927 = vmatpush1.msra.mxu0 %v1286
      %1928 = vmatprep.subr.mxu0 %v1289
      %1929 = vmatpush1.msra.mxu0 %v1288
      %1930 = vmatprep.subr.mxu0 %v1291
      %1931 = vmatpush1.msra.mxu0 %v1290
      %1932 = vmatprep.subr.mxu0 %v1293
      %1933 = vmatpush1.msra.mxu0 %v1292
      %1934 = vmatprep.subr.mxu0 %v1295
      %1935 = vmatpush1.msra.mxu0 %v1294
      %1936 = vmatprep.subr.mxu0 %v1297
      %1937 = vmatpush1.msra.mxu0 %v1296
      %1938 = vmatprep.subr.mxu0 %v1299
      %1939 = vmatpush1.msra.mxu0 %v1298
      %1940 = vmatprep.subr.mxu0 %v1301
      %1941 = vmatpush1.msra.mxu0 %v1300
      %1942 = vmatprep.subr.mxu0 %v1303
      %1943 = vmatpush1.msra.mxu0 %v1302
      %1944 = vmatprep.subr.mxu0 %v1305
      %1945 = vmatpush1.msra.mxu0 %v1304
      %1946 = vmatprep.subr.mxu0 %v1307
      %1947 = vmatpush1.msra.mxu0 %v1306
      %1948 = vmatprep.subr.mxu0 %v1309
      %1949 = vmatpush1.msra.mxu0 %v1308
      %1950 = vmatprep.subr.mxu0 %v1311
      %1951 = vmatpush1.msra.mxu0 %v1310
      %1952 = vmatprep.subr.mxu0 %v1313
      %1953 = vmatpush1.msra.mxu0 %v1312
      %1954 = vmatprep.mubr.f32.mxu0 %v1571
      %1955 = vmatmul.mubr.f32.gmra.mrb[0].mxu0 %v1563
      %v1956 = vpop.f32.mrb[0].mxu0
      %v1957 = vadd.f32 %v1886, %v1956
      %v1958 = vpop.f32.mrb[0].mxu0
      %v1959 = vadd.f32 %v1888, %v1958
      %1960 = vdwg.mxu0
      %1961 = vmatprep.subr.mxu0 %v1315
      %1962 = vmatpush1.msra.mxu0 %v1314
      %1963 = vmatprep.subr.mxu0 %v1317
      %1964 = vmatpush1.msra.mxu0 %v1316
      %1965 = vmatprep.subr.mxu0 %v1319
      %1966 = vmatpush1.msra.mxu0 %v1318
      %1967 = vmatprep.subr.mxu0 %v1321
      %1968 = vmatpush1.msra.mxu0 %v1320
      %1969 = vmatprep.subr.mxu0 %v1323
      %1970 = vmatpush1.msra.mxu0 %v1322
      %1971 = vmatprep.subr.mxu0 %v1325
      %1972 = vmatpush1.msra.mxu0 %v1324
      %1973 = vmatprep.subr.mxu0 %v1327
      %1974 = vmatpush1.msra.mxu0 %v1326
      %1975 = vmatprep.subr.mxu0 %v1329
      %1976 = vmatpush1.msra.mxu0 %v1328
      %1977 = vmatprep.subr.mxu0 %v1331
      %1978 = vmatpush1.msra.mxu0 %v1330
      %1979 = vmatprep.subr.mxu0 %v1333
      %1980 = vmatpush1.msra.mxu0 %v1332
      %1981 = vmatprep.subr.mxu0 %v1335
      %1982 = vmatpush1.msra.mxu0 %v1334
      %1983 = vmatprep.subr.mxu0 %v1337
      %1984 = vmatpush1.msra.mxu0 %v1336
      %1985 = vmatprep.subr.mxu0 %v1339
      %1986 = vmatpush1.msra.mxu0 %v1338
      %1987 = vmatprep.subr.mxu0 %v1341
      %1988 = vmatpush1.msra.mxu0 %v1340
      %1989 = vmatprep.subr.mxu0 %v1343
      %1990 = vmatpush1.msra.mxu0 %v1342
      %1991 = vmatprep.subr.mxu0 %v1345
      %1992 = vmatpush1.msra.mxu0 %v1344
      %1993 = vmatprep.subr.mxu0 %v1347
      %1994 = vmatpush1.msra.mxu0 %v1346
      %1995 = vmatprep.subr.mxu0 %v1349
      %1996 = vmatpush1.msra.mxu0 %v1348
      %1997 = vmatprep.subr.mxu0 %v1351
      %1998 = vmatpush1.msra.mxu0 %v1350
      %1999 = vmatprep.subr.mxu0 %v1353
      %2000 = vmatpush1.msra.mxu0 %v1352
      %2001 = vmatprep.subr.mxu0 %v1355
      %2002 = vmatpush1.msra.mxu0 %v1354
      %2003 = vmatprep.subr.mxu0 %v1357
      %2004 = vmatpush1.msra.mxu0 %v1356
      %2005 = vmatprep.subr.mxu0 %v1359
      %2006 = vmatpush1.msra.mxu0 %v1358
      %2007 = vmatprep.subr.mxu0 %v1361
      %2008 = vmatpush1.msra.mxu0 %v1360
      %2009 = vmatprep.subr.mxu0 %v1363
      %2010 = vmatpush1.msra.mxu0 %v1362
      %2011 = vmatprep.subr.mxu0 %v1365
      %2012 = vmatpush1.msra.mxu0 %v1364
      %2013 = vmatprep.subr.mxu0 %v1367
      %2014 = vmatpush1.msra.mxu0 %v1366
      %2015 = vmatprep.subr.mxu0 %v1369
      %2016 = vmatpush1.msra.mxu0 %v1368
      %2017 = vmatprep.subr.mxu0 %v1371
      %2018 = vmatpush1.msra.mxu0 %v1370
      %2019 = vmatprep.subr.mxu0 %v1373
      %2020 = vmatpush1.msra.mxu0 %v1372
      %2021 = vmatprep.subr.mxu0 %v1375
      %2022 = vmatpush1.msra.mxu0 %v1374
      %2023 = vmatprep.subr.mxu0 %v1377
      %2024 = vmatpush1.msra.mxu0 %v1376
      %2025 = vmatprep.mubr.f32.mxu0 %v1572
      %2026 = vmatmul.mubr.f32.gmra.mrb[0].mxu0 %v1570
      %v2027 = vpop.f32.mrb[0].mxu0
      %v2028 = vadd.f32 %v1957, %v2027
      %v2029 = vpop.f32.mrb[0].mxu0
      %v2030 = vadd.f32 %v1959, %v2029
      %2031 = vdwg.mxu0
      %2032 = vmatprep.subr.mxu0 %v1379
      %2033 = vmatpush1.msra.mxu0 %v1378
      %2034 = vmatprep.subr.mxu0 %v1381
      %2035 = vmatpush1.msra.mxu0 %v1380
      %2036 = vmatprep.subr.mxu0 %v1383
      %2037 = vmatpush1.msra.mxu0 %v1382
      %2038 = vmatprep.subr.mxu0 %v1385
      %2039 = vmatpush1.msra.mxu0 %v1384
      %2040 = vmatprep.subr.mxu0 %v1387
      %2041 = vmatpush1.msra.mxu0 %v1386
      %2042 = vmatprep.subr.mxu0 %v1389
      %2043 = vmatpush1.msra.mxu0 %v1388
      %2044 = vmatprep.subr.mxu0 %v1391
      %2045 = vmatpush1.msra.mxu0 %v1390
      %2046 = vmatprep.subr.mxu0 %v1393
      %2047 = vmatpush1.msra.mxu0 %v1392
      %2048 = vmatprep.subr.mxu0 %v1395
      %2049 = vmatpush1.msra.mxu0 %v1394
      %2050 = vmatprep.subr.mxu0 %v1397
      %2051 = vmatpush1.msra.mxu0 %v1396
      %2052 = vmatprep.subr.mxu0 %v1399
      %2053 = vmatpush1.msra.mxu0 %v1398
      %2054 = vmatprep.subr.mxu0 %v1401
      %2055 = vmatpush1.msra.mxu0 %v1400
      %2056 = vmatprep.subr.mxu0 %v1403
      %2057 = vmatpush1.msra.mxu0 %v1402
      %2058 = vmatprep.subr.mxu0 %v1405
      %2059 = vmatpush1.msra.mxu0 %v1404
      %2060 = vmatprep.subr.mxu0 %v1407
      %2061 = vmatpush1.msra.mxu0 %v1406
      %2062 = vmatprep.subr.mxu0 %v1409
      %2063 = vmatpush1.msra.mxu0 %v1408
      %2064 = vmatprep.subr.mxu0 %v1411
      %2065 = vmatpush1.msra.mxu0 %v1410
      %2066 = vmatprep.subr.mxu0 %v1413
      %2067 = vmatpush1.msra.mxu0 %v1412
      %2068 = vmatprep.subr.mxu0 %v1415
      %2069 = vmatpush1.msra.mxu0 %v1414
      %2070 = vmatprep.subr.mxu0 %v1417
      %2071 = vmatpush1.msra.mxu0 %v1416
      %2072 = vmatprep.subr.mxu0 %v1419
      %2073 = vmatpush1.msra.mxu0 %v1418
      %2074 = vmatprep.subr.mxu0 %v1421
      %2075 = vmatpush1.msra.mxu0 %v1420
      %2076 = vmatprep.subr.mxu0 %v1423
      %2077 = vmatpush1.msra.mxu0 %v1422
      %2078 = vmatprep.subr.mxu0 %v1425
      %2079 = vmatpush1.msra.mxu0 %v1424
      %2080 = vmatprep.subr.mxu0 %v1427
      %2081 = vmatpush1.msra.mxu0 %v1426
      %2082 = vmatprep.subr.mxu0 %v1429
      %2083 = vmatpush1.msra.mxu0 %v1428
      %2084 = vmatprep.subr.mxu0 %v1431
      %2085 = vmatpush1.msra.mxu0 %v1430
      %2086 = vmatprep.subr.mxu0 %v1433
      %2087 = vmatpush1.msra.mxu0 %v1432
      %2088 = vmatprep.subr.mxu0 %v1435
      %2089 = vmatpush1.msra.mxu0 %v1434
      %2090 = vmatprep.subr.mxu0 %v1437
      %2091 = vmatpush1.msra.mxu0 %v1436
      %2092 = vmatprep.subr.mxu0 %v1439
      %2093 = vmatpush1.msra.mxu0 %v1438
      %2094 = vmatprep.subr.mxu0 %v1441
      %2095 = vmatpush1.msra.mxu0 %v1440
      %2096 = vmatprep.mubr.f32.mxu0 %v1588
      %2097 = vmatmul.mubr.f32.gmra.mrb[0].mxu0 %v1580
      %v2098 = vpop.f32.mrb[0].mxu0
      %v2099 = vadd.f32 %v2028, %v2098
      %v2100 = vpop.f32.mrb[0].mxu0
      %v2101 = vadd.f32 %v2030, %v2100
      %2102 = vdwg.mxu0
      %2103 = vmatprep.subr.mxu0 %v1443
      %2104 = vmatpush1.msra.mxu0 %v1442
      %2105 = vmatprep.subr.mxu0 %v1445
      %2106 = vmatpush1.msra.mxu0 %v1444
      %2107 = vmatprep.subr.mxu0 %v1447
      %2108 = vmatpush1.msra.mxu0 %v1446
      %2109 = vmatprep.subr.mxu0 %v1449
      %2110 = vmatpush1.msra.mxu0 %v1448
      %2111 = vmatprep.subr.mxu0 %v1451
      %2112 = vmatpush1.msra.mxu0 %v1450
      %2113 = vmatprep.subr.mxu0 %v1453
      %2114 = vmatpush1.msra.mxu0 %v1452
      %2115 = vmatprep.subr.mxu0 %v1455
      %2116 = vmatpush1.msra.mxu0 %v1454
      %2117 = vmatprep.subr.mxu0 %v1457
      %2118 = vmatpush1.msra.mxu0 %v1456
      %2119 = vmatprep.subr.mxu0 %v1459
      %2120 = vmatpush1.msra.mxu0 %v1458
      %2121 = vmatprep.subr.mxu0 %v1461
      %2122 = vmatpush1.msra.mxu0 %v1460
      %2123 = vmatprep.subr.mxu0 %v1463
      %2124 = vmatpush1.msra.mxu0 %v1462
      %2125 = vmatprep.subr.mxu0 %v1465
      %2126 = vmatpush1.msra.mxu0 %v1464
      %2127 = vmatprep.subr.mxu0 %v1467
      %2128 = vmatpush1.msra.mxu0 %v1466
      %2129 = vmatprep.subr.mxu0 %v1469
      %2130 = vmatpush1.msra.mxu0 %v1468
      %2131 = vmatprep.subr.mxu0 %v1471
      %2132 = vmatpush1.msra.mxu0 %v1470
      %2133 = vmatprep.subr.mxu0 %v1473
      %2134 = vmatpush1.msra.mxu0 %v1472
      %2135 = vmatprep.subr.mxu0 %v1475
      %2136 = vmatpush1.msra.mxu0 %v1474
      %2137 = vmatprep.subr.mxu0 %v1477
      %2138 = vmatpush1.msra.mxu0 %v1476
      %2139 = vmatprep.subr.mxu0 %v1479
      %2140 = vmatpush1.msra.mxu0 %v1478
      %2141 = vmatprep.subr.mxu0 %v1481
      %2142 = vmatpush1.msra.mxu0 %v1480
      %2143 = vmatprep.subr.mxu0 %v1483
      %2144 = vmatpush1.msra.mxu0 %v1482
      %2145 = vmatprep.subr.mxu0 %v1485
      %2146 = vmatpush1.msra.mxu0 %v1484
      %2147 = vmatprep.subr.mxu0 %v1487
      %2148 = vmatpush1.msra.mxu0 %v1486
      %2149 = vmatprep.subr.mxu0 %v1489
      %2150 = vmatpush1.msra.mxu0 %v1488
      %2151 = vmatprep.subr.mxu0 %v1491
      %2152 = vmatpush1.msra.mxu0 %v1490
      %2153 = vmatprep.subr.mxu0 %v1493
      %2154 = vmatpush1.msra.mxu0 %v1492
      %2155 = vmatprep.subr.mxu0 %v1495
      %2156 = vmatpush1.msra.mxu0 %v1494
      %2157 = vmatprep.subr.mxu0 %v1497
      %2158 = vmatpush1.msra.mxu0 %v1496
      %2159 = vmatprep.subr.mxu0 %v1499
      %2160 = vmatpush1.msra.mxu0 %v1498
      %2161 = vmatprep.subr.mxu0 %v1501
      %2162 = vmatpush1.msra.mxu0 %v1500
      %2163 = vmatprep.subr.mxu0 %v1503
      %2164 = vmatpush1.msra.mxu0 %v1502
      %2165 = vmatprep.subr.mxu0 %v1505
      %2166 = vmatpush1.msra.mxu0 %v1504
      %2167 = vmatprep.mubr.f32.mxu0 %v1589
      %2168 = vmatmul.mubr.f32.gmra.mrb[0].mxu0 %v1587
      %v2169 = vpop.f32.mrb[0].mxu0
      %v2170 = vadd.f32 %v2099, %v2169
      %v2171 = vpop.f32.mrb[0].mxu0
      %v2172 = vadd.f32 %v2101, %v2171
      %2173 = vdwg.mxu0
      %v2174 = vmax.f32 %v2170, 0.0
      %v2175 = vmax.f32 %v2172, 0.0
      %v2176 = vld [vmem:[#allocation9] sm:$0xff]
      %v2177 = vld [vmem:[#allocation9 + $0x8] sm:$0xff]
      %v2178 = vld [vmem:[#allocation9 + $0x10] sm:$0xff]
      %v2179 = vld [vmem:[#allocation9 + $0x18] sm:$0xff]
      %v2180 = vld [vmem:[#allocation9 + $0x20] sm:$0xff]
      %v2181 = vld [vmem:[#allocation9 + $0x28] sm:$0xff]
      %v2182 = vld [vmem:[#allocation9 + $0x30] sm:$0xff]
      %v2183 = vld [vmem:[#allocation9 + $0x38] sm:$0xff]
      %v2184 = vld [vmem:[#allocation9 + $0x40] sm:$0xff]
      %v2185 = vld [vmem:[#allocation9 + $0x48] sm:$0xff]
      %v2186 = vld [vmem:[#allocation9 + $0x50] sm:$0xff]
      %v2187 = vld [vmem:[#allocation9 + $0x58] sm:$0xff]
      %v2188 = vld [vmem:[#allocation9 + $0x60] sm:$0xff]
      %v2189 = vld [vmem:[#allocation9 + $0x68] sm:$0xff]
      %v2190 = vld [vmem:[#allocation9 + $0x70] sm:$0xff]
      %v2191 = vld [vmem:[#allocation9 + $0x78] sm:$0xff]
      %v2192 = vld [vmem:[#allocation9 + $0x80] sm:$0xff]
      %v2193 = vld [vmem:[#allocation9 + $0x88] sm:$0xff]
      %v2194 = vld [vmem:[#allocation9 + $0x90] sm:$0xff]
      %v2195 = vld [vmem:[#allocation9 + $0x98] sm:$0xff]
      %v2196 = vld [vmem:[#allocation9 + $0xa0] sm:$0xff]
      %v2197 = vld [vmem:[#allocation9 + $0xa8] sm:$0xff]
      %v2198 = vld [vmem:[#allocation9 + $0xb0] sm:$0xff]
      %v2199 = vld [vmem:[#allocation9 + $0xb8] sm:$0xff]
      %v2200 = vld [vmem:[#allocation9 + $0xc0] sm:$0xff]
      %v2201 = vld [vmem:[#allocation9 + $0xc8] sm:$0xff]
      %v2202 = vld [vmem:[#allocation9 + $0xd0] sm:$0xff]
      %v2203 = vld [vmem:[#allocation9 + $0xd8] sm:$0xff]
      %v2204 = vld [vmem:[#allocation9 + $0xe0] sm:$0xff]
      %v2205 = vld [vmem:[#allocation9 + $0xe8] sm:$0xff]
      %v2206 = vld [vmem:[#allocation9 + $0xf0] sm:$0xff]
      %v2207 = vld [vmem:[#allocation9 + $0xf8] sm:$0xff]
      %v2208 = vld [vmem:[#allocation11] sm:$0x1]
      %v2210 = vlaneseq
      %v2211 = vshrl.u32 %v2210, 7
      %v2212 = vsub.s32 0, %v2211
      %v2213 = vrot.slane %v2208, %v2212
      %2215 = vmatprep.subr.mxu0 0.0
      %2216 = vmatpush1.msra.mxu0 %v2176
      %2217 = vmatprep.subr.mxu0 0.0
      %2218 = vmatpush1.msra.mxu0 %v2177
      %2219 = vmatprep.subr.mxu0 0.0
      %2220 = vmatpush1.msra.mxu0 %v2178
      %2221 = vmatprep.subr.mxu0 0.0
      %2222 = vmatpush1.msra.mxu0 %v2179
      %2223 = vmatprep.subr.mxu0 0.0
      %2224 = vmatpush1.msra.mxu0 %v2180
      %2225 = vmatprep.subr.mxu0 0.0
      %2226 = vmatpush1.msra.mxu0 %v2181
      %2227 = vmatprep.subr.mxu0 0.0
      %2228 = vmatpush1.msra.mxu0 %v2182
      %2229 = vmatprep.subr.mxu0 0.0
      %2230 = vmatpush1.msra.mxu0 %v2183
      %2231 = vmatprep.subr.mxu0 0.0
      %2232 = vmatpush1.msra.mxu0 %v2184
      %2233 = vmatprep.subr.mxu0 0.0
      %2234 = vmatpush1.msra.mxu0 %v2185
      %2235 = vmatprep.subr.mxu0 0.0
      %2236 = vmatpush1.msra.mxu0 %v2186
      %2237 = vmatprep.subr.mxu0 0.0
      %2238 = vmatpush1.msra.mxu0 %v2187
      %2239 = vmatprep.subr.mxu0 0.0
      %2240 = vmatpush1.msra.mxu0 %v2188
      %2241 = vmatprep.subr.mxu0 0.0
      %2242 = vmatpush1.msra.mxu0 %v2189
      %2243 = vmatprep.subr.mxu0 0.0
      %2244 = vmatpush1.msra.mxu0 %v2190
      %2245 = vmatprep.subr.mxu0 0.0
      %2246 = vmatpush1.msra.mxu0 %v2191
      %2247 = vmatprep.subr.mxu0 0.0
      %2248 = vmatpush1.msra.mxu0 %v2192
      %2249 = vmatprep.subr.mxu0 0.0
      %2250 = vmatpush1.msra.mxu0 %v2193
      %2251 = vmatprep.subr.mxu0 0.0
      %2252 = vmatpush1.msra.mxu0 %v2194
      %2253 = vmatprep.subr.mxu0 0.0
      %2254 = vmatpush1.msra.mxu0 %v2195
      %2255 = vmatprep.subr.mxu0 0.0
      %2256 = vmatpush1.msra.mxu0 %v2196
      %2257 = vmatprep.subr.mxu0 0.0
      %2258 = vmatpush1.msra.mxu0 %v2197
      %2259 = vmatprep.subr.mxu0 0.0
      %2260 = vmatpush1.msra.mxu0 %v2198
      %2261 = vmatprep.subr.mxu0 0.0
      %2262 = vmatpush1.msra.mxu0 %v2199
      %2263 = vmatprep.subr.mxu0 0.0
      %2264 = vmatpush1.msra.mxu0 %v2200
      %2265 = vmatprep.subr.mxu0 0.0
      %2266 = vmatpush1.msra.mxu0 %v2201
      %2267 = vmatprep.subr.mxu0 0.0
      %2268 = vmatpush1.msra.mxu0 %v2202
      %2269 = vmatprep.subr.mxu0 0.0
      %2270 = vmatpush1.msra.mxu0 %v2203
      %2271 = vmatprep.subr.mxu0 0.0
      %2272 = vmatpush1.msra.mxu0 %v2204
      %2273 = vmatprep.subr.mxu0 0.0
      %2274 = vmatpush1.msra.mxu0 %v2205
      %2275 = vmatprep.subr.mxu0 0.0
      %2276 = vmatpush1.msra.mxu0 %v2206
      %2277 = vmatprep.subr.mxu0 0.0
      %2278 = vmatpush1.msra.mxu0 %v2207
      %2279 = vmatprep.mubr.f32.mxu0 %v2175
      %2280 = vmatmul.mubr.f32.gmra.mrb[0].mxu0 %v2174
      %v2281 = vpop.f32.mrb[0].mxu0
      %v2282 = vadd.f32 %v2213, %v2281
      %v2283 = vpop.f32.mrb[0].mxu0
      %2284 = vdwg.mxu0
      %2285 = vst [vmem:[#allocation12] sm:$0x3] %v2282
    $region49: #{tpu_custom_call.1} parent=1 // pred_fallthru
      _
    // Predicated region
    $region50: #{tpu_custom_call.1} parent=1 // pred_check
      _
    $region51: #{tpu_custom_call.1} parent=1 // pred_check_branch
      %2287 = sbr.rel (0) target = $region53
    $region52: #{tpu_custom_call.1} parent=1 // pred_region
      %s2289 = ssub.s32 32, 32
      %2290 = vsyncadd [#allocation5], %s2289
      %s2292 = sshll.u32 [#allocation12], 4
      %s2293 = int_to_ptr.vmem [resolvable:$true] %s2292
      %2295 = dma.vmem_to_hbm [thread:$0]  %s2293, 32, %s5, [#allocation5]
    $region53: #{tpu_custom_call.1} parent=1 // pred_fallthru
      _
    // Predicated region
    $region54: #{tpu_custom_call.1} parent=1 // pred_check
      _
    $region55: #{tpu_custom_call.1} parent=1 // pred_check_branch
      %2297 = sbr.rel (0) target = $region57
    $region56: #{tpu_custom_call.1} parent=1 // pred_region
      %2298 = dma.done [#allocation5], 32
    $region57: #{tpu_custom_call.1} parent=1 // pred_fallthru
      _
    %2299 = vsyncpa [#allocation4], 1
    %2300 = vsyncpa [#allocation7], 1
    %2301 = vsyncpa [#allocation10], 1
    %2302 = vsyncpa [#allocation5], 1

</llo_original>
